<compile_context>
chip_gen: v7x
topology: tpu7x:2x2x1
jax: 0.10.0
libtpu: 0.0.40
codegen_flags: <defaults>
</compile_context>

<pallas_src>
import numpy as np
import jax
import jax.numpy as jnp
from jax import lax
from jax.experimental import pallas as pl
from jax.experimental.pallas import tpu as pltpu


# ----------------------------- tap construction (trace time, numpy) -----------

def _make_kernel_np(k):
    k = np.asarray(k, dtype=np.float64)
    if k.ndim == 1:
        k = np.outer(k, k)
    return k / k.sum()


def make_kernel(k):
    k = jnp.asarray(k, dtype=jnp.float32)
    if k.ndim == 1:
        k = k[None, :] * k[:, None]
    return k / jnp.sum(k)


def _phase_taps_1d(klen, factor, pad0):
    """For each output phase py, list of (dy, flipped-tap index) pairs such that
    out[factor*i + py] = sum K[idx] * x[i + dy]   (x zero outside [0, H))."""
    taps = []
    for py in range(factor):
        lst = []
        for j in range(klen):
            t = py + j - pad0
            if t % factor == 0:
                lst.append((t // factor, klen - 1 - j))
        taps.append(lst)
    return taps


# ----------------------------- Pallas upsample --------------------------------

def upsample_pallas(x, kernel_1d, factor=2):
    """Equivalent of Upsample(kernel_1d, factor).forward(x); x is NCHW."""
    n, c, h, w = x.shape
    k2d = _make_kernel_np(kernel_1d) * (factor ** 2)
    kh, kw = k2d.shape
    p = kh - factor
    pad0 = (p + 1) // 2 + factor - 1
    pad1 = p // 2
    # The module's pad formula always gives pad0 + pad1 == kh - 1, hence the
    # output spatial size is exactly (H*factor, W*factor).
    assert pad0 + pad1 == kh - 1

    ty = _phase_taps_1d(kh, factor, pad0)
    tx = _phase_taps_1d(kw, factor, pad0)

    # Per-phase 2D taps (dy, dx, coeff) with coefficients baked as python floats.
    taps2d = [[[] for _ in range(factor)] for _ in range(factor)]
    all_dy, all_dx = [0], [0]
    for py in range(factor):
        for px in range(factor):
            for dy, jy in ty[py]:
                for dx, jx in tx[px]:
                    cf = float(k2d[jy, jx])
                    if cf != 0.0:
                        taps2d[py][px].append((dy, dx, cf))
                        all_dy.append(dy)
                        all_dx.append(dx)
    hy0, hy1 = max(0, -min(all_dy)), max(0, max(all_dy))   # 1-pixel halo for kh=4,f=2
    hx0, hx1 = max(0, -min(all_dx)), max(0, max(all_dx))

    nc = n * c
    h_out, w_out = h * factor, w * factor

    # --- layout plumbing (plain XLA): NCHW -> channel-last + halo pad ---------
    x_cl = jnp.transpose(x, (2, 3, 0, 1)).reshape(h, w, nc).astype(jnp.float32)
    xp = jnp.pad(x_cl, ((hy0, hy1), (hx0, hx1), (0, 0)))
    hp, wp = h + hy0 + hy1, w + hx0 + hx1

    # Channel tiling: lane-dense blocks when N*C is a multiple of 128, otherwise
    # a single full-channel block (last block dim == full array dim is legal).
    tc = nc
    for cand in (512, 256, 128):
        if nc % cand == 0:
            tc = cand
            break
    grid = (nc // tc,)

    nphase = factor * factor

    def _poly_fir_kernel(xp_ref, o_ref):
        # xp_ref: (hp, wp, tc) halo-padded input, channels on lanes
        # o_ref : (nphase, h, w, tc) per-phase outputs (contiguous, lane-dense)
        for py in range(factor):
            for px in range(factor):
                acc = None
                for dy, dx, cf in taps2d[py][px]:
                    y0, x0 = dy + hy0, dx + hx0
                    term = cf * xp_ref[y0:y0 + h, x0:x0 + w, :]
                    acc = term if acc is None else acc + term
                if acc is None:
                    acc = jnp.zeros((h, w, tc), jnp.float32)
                o_ref[py * factor + px, :, :, :] = acc

    out = pl.pallas_call(
        _poly_fir_kernel,
        out_shape=jax.ShapeDtypeStruct((nphase, h, w, nc), jnp.float32),
        grid=grid,
        in_specs=[pl.BlockSpec((hp, wp, tc), lambda i: (0, 0, i))],
        out_specs=pl.BlockSpec((nphase, h, w, tc), lambda i: (0, 0, 0, i)),
        compiler_params=pltpu.CompilerParams(dimension_semantics=("parallel",)),
    )(xp)

    # --- phase recombination + back to NCHW (plain XLA) -----------------------
    o = out.reshape(factor, factor, h, w, nc)            # (py, px, i, j, c)
    y = jnp.transpose(o, (2, 0, 3, 1, 4)).reshape(h_out, w_out, n, c)
    return jnp.transpose(y, (2, 3, 0, 1)).astype(x.dtype)


# ----------------------------- pure-JAX reference -----------------------------

def _reference_upsample(x, kernel_1d, factor=2):
    """Pure-JAX reference via dilated convolution (matches upfirdn2d)."""
    n, c, h, w = x.shape
    k = make_kernel(kernel_1d) * (factor ** 2)
    kh, kw = k.shape
    p = kh - factor
    pad0 = (p + 1) // 2 + factor - 1
    pad1 = p // 2
    rhs = jnp.flip(k, (0, 1))[None, None]  # true convolution
    out = lax.conv_general_dilated(
        x.reshape(n * c, 1, h, w).astype(jnp.float32),
        rhs,
        window_strides=(1, 1),
        padding=[(pad0, pad1 + factor - 1), (pad0, pad1 + factor - 1)],
        lhs_dilation=(factor, factor),
        dimension_numbers=("NCHW", "OIHW", "NCHW"),
    )
    h_out = h * factor + pad0 + pad1 - kh + 1
    w_out = w * factor + pad0 + pad1 - kw + 1
    return out.reshape(n, c, h_out, w_out)


if __name__ == "__main__":
    key = jax.random.PRNGKey(0)
    x = jax.random.normal(key, (2, 4, 16, 16), dtype=jnp.float32)
    factor = 2

    # Standard StyleGAN2 blur taps.
    blur_kernel = [1.0, 3.0, 3.0, 1.0]
    out = jax.block_until_ready(upsample_pallas(x, blur_kernel, factor=factor))
    assert out.shape == (2, 4, 32, 32), out.shape
    ref = jax.block_until_ready(_reference_upsample(x, blur_kernel, factor=factor))
    np.testing.assert_allclose(np.asarray(out), np.asarray(ref), rtol=1e-5, atol=1e-5)

    # Asymmetric taps exercise the kernel flip / polyphase index math.
    asym_kernel = [1.0, 2.0, 3.0, 4.0]
    out2 = jax.block_until_ready(upsample_pallas(x, asym_kernel, factor=factor))
    ref2 = jax.block_until_ready(_reference_upsample(x, asym_kernel, factor=factor))
    np.testing.assert_allclose(np.asarray(out2), np.asarray(ref2), rtol=1e-5, atol=1e-5)

    print("KERNEL_OK")
</pallas_src>

<mosaic_0001>
module attributes {stable_mosaic.version = 11 : i64} {
  func.func @_poly_fir_kernel(%arg0: i32, %arg1: memref<18x18x8xf32, #tpu.memory_space<vmem>>, %arg2: memref<4x16x16x8xf32, #tpu.memory_space<vmem>>) attributes {dimension_semantics = [#tpu.dimension_semantics<parallel>], iteration_bounds = array<i64: 1>, scalar_prefetch = 0 : i64, scratch_operands = 0 : i64, tpu.core_type = #tpu.core_type<tc>, window_params = [{transform_indices = @transform_0, window_bounds = array<i64: 18, 18, 8>}, {transform_indices = @transform_1, window_bounds = array<i64: 4, 16, 16, 8>}]} {
    %c0 = arith.constant 0 : index
    %c0_0 = arith.constant 0 : index
    %c0_1 = arith.constant 0 : index
    %0 = vector.load %arg1[%c0, %c0_0, %c0_1] : memref<18x18x8xf32, #tpu.memory_space<vmem>>, vector<16x16x8xf32>
    %cst = arith.constant 6.250000e-02 : f32
    %1 = vector.broadcast %cst : f32 to vector<16x16x8xf32>
    %2 = arith.mulf %1, %0 : vector<16x16x8xf32>
    %c0_2 = arith.constant 0 : index
    %c1 = arith.constant 1 : index
    %c0_3 = arith.constant 0 : index
    %3 = vector.load %arg1[%c0_2, %c1, %c0_3] : memref<18x18x8xf32, #tpu.memory_space<vmem>>, vector<16x16x8xf32>
    %cst_4 = arith.constant 1.875000e-01 : f32
    %4 = vector.broadcast %cst_4 : f32 to vector<16x16x8xf32>
    %5 = arith.mulf %4, %3 : vector<16x16x8xf32>
    %6 = arith.addf %2, %5 : vector<16x16x8xf32>
    %c1_5 = arith.constant 1 : index
    %c0_6 = arith.constant 0 : index
    %c0_7 = arith.constant 0 : index
    %7 = vector.load %arg1[%c1_5, %c0_6, %c0_7] : memref<18x18x8xf32, #tpu.memory_space<vmem>>, vector<16x16x8xf32>
    %cst_8 = arith.constant 1.875000e-01 : f32
    %8 = vector.broadcast %cst_8 : f32 to vector<16x16x8xf32>
    %9 = arith.mulf %8, %7 : vector<16x16x8xf32>
    %10 = arith.addf %6, %9 : vector<16x16x8xf32>
    %c1_9 = arith.constant 1 : index
    %c1_10 = arith.constant 1 : index
    %c0_11 = arith.constant 0 : index
    %11 = vector.load %arg1[%c1_9, %c1_10, %c0_11] : memref<18x18x8xf32, #tpu.memory_space<vmem>>, vector<16x16x8xf32>
    %cst_12 = arith.constant 5.625000e-01 : f32
    %12 = vector.broadcast %cst_12 : f32 to vector<16x16x8xf32>
    %13 = arith.mulf %12, %11 : vector<16x16x8xf32>
    %14 = arith.addf %10, %13 : vector<16x16x8xf32>
    %c0_13 = arith.constant 0 : index
    %c0_14 = arith.constant 0 : index
    %c0_15 = arith.constant 0 : index
    %c0_16 = arith.constant 0 : index
    %15 = vector.load %arg2[%c0_13, %c0_14, %c0_15, %c0_16] : memref<4x16x16x8xf32, #tpu.memory_space<vmem>>, vector<1x16x16x8xf32>
    %16 = vector.shape_cast %15 : vector<1x16x16x8xf32> to vector<16x16x8xf32>
    %17 = vector.shape_cast %14 : vector<16x16x8xf32> to vector<1x16x16x8xf32>
    tpu.vector_store %arg2[%c0_13, %c0_14, %c0_15, %c0_16], %17 {strides = array<i32>} : memref<4x16x16x8xf32, #tpu.memory_space<vmem>>, vector<1x16x16x8xf32>,
    %c0_17 = arith.constant 0 : index
    %c1_18 = arith.constant 1 : index
    %c0_19 = arith.constant 0 : index
    %18 = vector.load %arg1[%c0_17, %c1_18, %c0_19] : memref<18x18x8xf32, #tpu.memory_space<vmem>>, vector<16x16x8xf32>
    %cst_20 = arith.constant 1.875000e-01 : f32
    %19 = vector.broadcast %cst_20 : f32 to vector<16x16x8xf32>
    %20 = arith.mulf %19, %18 : vector<16x16x8xf32>
    %c0_21 = arith.constant 0 : index
    %c2 = arith.constant 2 : index
    %c0_22 = arith.constant 0 : index
    %21 = vector.load %arg1[%c0_21, %c2, %c0_22] : memref<18x18x8xf32, #tpu.memory_space<vmem>>, vector<16x16x8xf32>
    %cst_23 = arith.constant 6.250000e-02 : f32
    %22 = vector.broadcast %cst_23 : f32 to vector<16x16x8xf32>
    %23 = arith.mulf %22, %21 : vector<16x16x8xf32>
    %24 = arith.addf %20, %23 : vector<16x16x8xf32>
    %c1_24 = arith.constant 1 : index
    %c1_25 = arith.constant 1 : index
    %c0_26 = arith.constant 0 : index
    %25 = vector.load %arg1[%c1_24, %c1_25, %c0_26] : memref<18x18x8xf32, #tpu.memory_space<vmem>>, vector<16x16x8xf32>
    %cst_27 = arith.constant 5.625000e-01 : f32
    %26 = vector.broadcast %cst_27 : f32 to vector<16x16x8xf32>
    %27 = arith.mulf %26, %25 : vector<16x16x8xf32>
    %28 = arith.addf %24, %27 : vector<16x16x8xf32>
    %c1_28 = arith.constant 1 : index
    %c2_29 = arith.constant 2 : index
    %c0_30 = arith.constant 0 : index
    %29 = vector.load %arg1[%c1_28, %c2_29, %c0_30] : memref<18x18x8xf32, #tpu.memory_space<vmem>>, vector<16x16x8xf32>
    %cst_31 = arith.constant 1.875000e-01 : f32
    %30 = vector.broadcast %cst_31 : f32 to vector<16x16x8xf32>
    %31 = arith.mulf %30, %29 : vector<16x16x8xf32>
    %32 = arith.addf %28, %31 : vector<16x16x8xf32>
    %c1_32 = arith.constant 1 : index
    %c0_33 = arith.constant 0 : index
    %c0_34 = arith.constant 0 : index
    %c0_35 = arith.constant 0 : index
    %33 = vector.load %arg2[%c1_32, %c0_33, %c0_34, %c0_35] : memref<4x16x16x8xf32, #tpu.memory_space<vmem>>, vector<1x16x16x8xf32>
    %34 = vector.shape_cast %33 : vector<1x16x16x8xf32> to vector<16x16x8xf32>
    %35 = vector.shape_cast %32 : vector<16x16x8xf32> to vector<1x16x16x8xf32>
    tpu.vector_store %arg2[%c1_32, %c0_33, %c0_34, %c0_35], %35 {strides = array<i32>} : memref<4x16x16x8xf32, #tpu.memory_space<vmem>>, vector<1x16x16x8xf32>,
    %c1_36 = arith.constant 1 : index
    %c0_37 = arith.constant 0 : index
    %c0_38 = arith.constant 0 : index
    %36 = vector.load %arg1[%c1_36, %c0_37, %c0_38] : memref<18x18x8xf32, #tpu.memory_space<vmem>>, vector<16x16x8xf32>
    %cst_39 = arith.constant 1.875000e-01 : f32
    %37 = vector.broadcast %cst_39 : f32 to vector<16x16x8xf32>
    %38 = arith.mulf %37, %36 : vector<16x16x8xf32>
    %c1_40 = arith.constant 1 : index
    %c1_41 = arith.constant 1 : index
    %c0_42 = arith.constant 0 : index
    %39 = vector.load %arg1[%c1_40, %c1_41, %c0_42] : memref<18x18x8xf32, #tpu.memory_space<vmem>>, vector<16x16x8xf32>
    %cst_43 = arith.constant 5.625000e-01 : f32
    %40 = vector.broadcast %cst_43 : f32 to vector<16x16x8xf32>
    %41 = arith.mulf %40, %39 : vector<16x16x8xf32>
    %42 = arith.addf %38, %41 : vector<16x16x8xf32>
    %c2_44 = arith.constant 2 : index
    %c0_45 = arith.constant 0 : index
    %c0_46 = arith.constant 0 : index
    %43 = vector.load %arg1[%c2_44, %c0_45, %c0_46] : memref<18x18x8xf32, #tpu.memory_space<vmem>>, vector<16x16x8xf32>
    %cst_47 = arith.constant 6.250000e-02 : f32
    %44 = vector.broadcast %cst_47 : f32 to vector<16x16x8xf32>
    %45 = arith.mulf %44, %43 : vector<16x16x8xf32>
    %46 = arith.addf %42, %45 : vector<16x16x8xf32>
    %c2_48 = arith.constant 2 : index
    %c1_49 = arith.constant 1 : index
    %c0_50 = arith.constant 0 : index
    %47 = vector.load %arg1[%c2_48, %c1_49, %c0_50] : memref<18x18x8xf32, #tpu.memory_space<vmem>>, vector<16x16x8xf32>
    %cst_51 = arith.constant 1.875000e-01 : f32
    %48 = vector.broadcast %cst_51 : f32 to vector<16x16x8xf32>
    %49 = arith.mulf %48, %47 : vector<16x16x8xf32>
    %50 = arith.addf %46, %49 : vector<16x16x8xf32>
    %c2_52 = arith.constant 2 : index
    %c0_53 = arith.constant 0 : index
    %c0_54 = arith.constant 0 : index
    %c0_55 = arith.constant 0 : index
    %51 = vector.load %arg2[%c2_52, %c0_53, %c0_54, %c0_55] : memref<4x16x16x8xf32, #tpu.memory_space<vmem>>, vector<1x16x16x8xf32>
    %52 = vector.shape_cast %51 : vector<1x16x16x8xf32> to vector<16x16x8xf32>
    %53 = vector.shape_cast %50 : vector<16x16x8xf32> to vector<1x16x16x8xf32>
    tpu.vector_store %arg2[%c2_52, %c0_53, %c0_54, %c0_55], %53 {strides = array<i32>} : memref<4x16x16x8xf32, #tpu.memory_space<vmem>>, vector<1x16x16x8xf32>,
    %c1_56 = arith.constant 1 : index
    %c1_57 = arith.constant 1 : index
    %c0_58 = arith.constant 0 : index
    %54 = vector.load %arg1[%c1_56, %c1_57, %c0_58] : memref<18x18x8xf32, #tpu.memory_space<vmem>>, vector<16x16x8xf32>
    %cst_59 = arith.constant 5.625000e-01 : f32
    %55 = vector.broadcast %cst_59 : f32 to vector<16x16x8xf32>
    %56 = arith.mulf %55, %54 : vector<16x16x8xf32>
    %c1_60 = arith.constant 1 : index
    %c2_61 = arith.constant 2 : index
    %c0_62 = arith.constant 0 : index
    %57 = vector.load %arg1[%c1_60, %c2_61, %c0_62] : memref<18x18x8xf32, #tpu.memory_space<vmem>>, vector<16x16x8xf32>
    %cst_63 = arith.constant 1.875000e-01 : f32
    %58 = vector.broadcast %cst_63 : f32 to vector<16x16x8xf32>
    %59 = arith.mulf %58, %57 : vector<16x16x8xf32>
    %60 = arith.addf %56, %59 : vector<16x16x8xf32>
    %c2_64 = arith.constant 2 : index
    %c1_65 = arith.constant 1 : index
    %c0_66 = arith.constant 0 : index
    %61 = vector.load %arg1[%c2_64, %c1_65, %c0_66] : memref<18x18x8xf32, #tpu.memory_space<vmem>>, vector<16x16x8xf32>
    %cst_67 = arith.constant 1.875000e-01 : f32
    %62 = vector.broadcast %cst_67 : f32 to vector<16x16x8xf32>
    %63 = arith.mulf %62, %61 : vector<16x16x8xf32>
    %64 = arith.addf %60, %63 : vector<16x16x8xf32>
    %c2_68 = arith.constant 2 : index
    %c2_69 = arith.constant 2 : index
    %c0_70 = arith.constant 0 : index
    %65 = vector.load %arg1[%c2_68, %c2_69, %c0_70] : memref<18x18x8xf32, #tpu.memory_space<vmem>>, vector<16x16x8xf32>
    %cst_71 = arith.constant 6.250000e-02 : f32
    %66 = vector.broadcast %cst_71 : f32 to vector<16x16x8xf32>
    %67 = arith.mulf %66, %65 : vector<16x16x8xf32>
    %68 = arith.addf %64, %67 : vector<16x16x8xf32>
    %c3 = arith.constant 3 : index
    %c0_72 = arith.constant 0 : index
    %c0_73 = arith.constant 0 : index
    %c0_74 = arith.constant 0 : index
    %69 = vector.load %arg2[%c3, %c0_72, %c0_73, %c0_74] : memref<4x16x16x8xf32, #tpu.memory_space<vmem>>, vector<1x16x16x8xf32>
    %70 = vector.shape_cast %69 : vector<1x16x16x8xf32> to vector<16x16x8xf32>
    %71 = vector.shape_cast %68 : vector<16x16x8xf32> to vector<1x16x16x8xf32>
    tpu.vector_store %arg2[%c3, %c0_72, %c0_73, %c0_74], %71 {strides = array<i32>} : memref<4x16x16x8xf32, #tpu.memory_space<vmem>>, vector<1x16x16x8xf32>,
    return
  }
  func.func @transform_0(%arg0: i32) -> (i32, i32, i32) {
    %c0_i32 = arith.constant 0 : i32
    %c0_i32_0 = arith.constant 0 : i32
    %c0_i32_1 = arith.constant 0 : i32
    return %c0_i32, %c0_i32_0, %arg0 : i32, i32, i32
  }
  func.func @transform_1(%arg0: i32) -> (i32, i32, i32, i32) {
    %c0_i32 = arith.constant 0 : i32
    %c0_i32_0 = arith.constant 0 : i32
    %c0_i32_1 = arith.constant 0 : i32
    %c0_i32_2 = arith.constant 0 : i32
    return %c0_i32, %c0_i32_0, %c0_i32_1, %arg0 : i32, i32, i32, i32
  }
}

</mosaic_0001>

<llo_original>
// kernel: tpu_custom_call.1
$region0: #{tpu_custom_call.1}
  #allocation0 [shape = 'u32[]', space=smem, size = 0x4, offset = 0x4, fixed_abs, tag = 'smem constant byte address 0x4 - core index']
  #allocation1 [shape = 'u32[144,128]{1,0:T(1,128)}', space=vmem, size = 0x12000, scoped, tag = 'internal scratch']
  %s0 = inlined_call_operand.vmem [shape: f32[18,18,8], index: 0, kind: input, shape index: {}]
  %s1 = inlined_call_operand.vmem [shape: f32[4,16,16,8], index: 1, kind: output, shape index: {}]
  %s2 = sld [smem:[#allocation0]]
  $region14: #{tpu_custom_call.1} parent=0
    _
  %s4 = ssub.s32 1, %s2
  %s5 = scalar_select 0, %s4, %s2
  // Predicated region
  $region2: #{tpu_custom_call.1} parent=0 // pred_check
    _
  $region3: #{tpu_custom_call.1} parent=0 // pred_check_branch
    %7 = sbr.rel (0) target = $region5
  $region4: #{tpu_custom_call.1} parent=0 // pred_region
    _
  $region5: #{tpu_custom_call.1} parent=0 // pred_fallthru
    _
  %v8 = vld [vmem:[%s0] sm:$0xff]
  %v9 = vld [vmem:[%s0 + $0x8] sm:$0xff]
  %v10 = vld [vmem:[%s0 + $0x18] sm:$0xff]
  %v11 = vld [vmem:[%s0 + $0x20] sm:$0xff]
  %v12 = vld [vmem:[%s0 + $0x30] sm:$0xff]
  %v13 = vld [vmem:[%s0 + $0x38] sm:$0xff]
  %v14 = vld [vmem:[%s0 + $0x48] sm:$0xff]
  %v15 = vld [vmem:[%s0 + $0x50] sm:$0xff]
  %v16 = vld [vmem:[%s0 + $0x60] sm:$0xff]
  %v17 = vld [vmem:[%s0 + $0x68] sm:$0xff]
  %v18 = vld [vmem:[%s0 + $0x78] sm:$0xff]
  %v19 = vld [vmem:[%s0 + $0x80] sm:$0xff]
  %v20 = vld [vmem:[%s0 + $0x90] sm:$0xff]
  %v21 = vld [vmem:[%s0 + $0x98] sm:$0xff]
  %v22 = vld [vmem:[%s0 + $0xa8] sm:$0xff]
  %v23 = vld [vmem:[%s0 + $0xb0] sm:$0xff]
  %v24 = vld [vmem:[%s0 + $0xc0] sm:$0xff]
  %v25 = vld [vmem:[%s0 + $0xc8] sm:$0xff]
  %v26 = vld [vmem:[%s0 + $0xd8] sm:$0xff]
  %v27 = vld [vmem:[%s0 + $0xe0] sm:$0xff]
  %v28 = vld [vmem:[%s0 + $0xf0] sm:$0xff]
  %v29 = vld [vmem:[%s0 + $0xf8] sm:$0xff]
  %v30 = vld [vmem:[%s0 + $0x108] sm:$0xff]
  %v31 = vld [vmem:[%s0 + $0x110] sm:$0xff]
  %v32 = vld [vmem:[%s0 + $0x120] sm:$0xff]
  %v33 = vld [vmem:[%s0 + $0x128] sm:$0xff]
  %v34 = vld [vmem:[%s0 + $0x138] sm:$0xff]
  %v35 = vld [vmem:[%s0 + $0x140] sm:$0xff]
  %v36 = vld [vmem:[%s0 + $0x150] sm:$0xff]
  %v37 = vld [vmem:[%s0 + $0x158] sm:$0xff]
  %v38 = vld [vmem:[%s0 + $0x168] sm:$0xff]
  %v39 = vld [vmem:[%s0 + $0x170] sm:$0xff]
  %v40 = vmul.f32 %v8, 0.0625
  %v41 = vmul.f32 %v9, 0.0625
  %v42 = vmul.f32 %v10, 0.0625
  %v43 = vmul.f32 %v11, 0.0625
  %v44 = vmul.f32 %v12, 0.0625
  %v45 = vmul.f32 %v13, 0.0625
  %v46 = vmul.f32 %v14, 0.0625
  %v47 = vmul.f32 %v15, 0.0625
  %v48 = vmul.f32 %v16, 0.0625
  %v49 = vmul.f32 %v17, 0.0625
  %v50 = vmul.f32 %v18, 0.0625
  %v51 = vmul.f32 %v19, 0.0625
  %v52 = vmul.f32 %v20, 0.0625
  %v53 = vmul.f32 %v21, 0.0625
  %v54 = vmul.f32 %v22, 0.0625
  %v55 = vmul.f32 %v23, 0.0625
  %v56 = vmul.f32 %v24, 0.0625
  %v57 = vmul.f32 %v25, 0.0625
  %v58 = vmul.f32 %v26, 0.0625
  %v59 = vmul.f32 %v27, 0.0625
  %v60 = vmul.f32 %v28, 0.0625
  %v61 = vmul.f32 %v29, 0.0625
  %v62 = vmul.f32 %v30, 0.0625
  %v63 = vmul.f32 %v31, 0.0625
  %v64 = vmul.f32 %v32, 0.0625
  %v65 = vmul.f32 %v33, 0.0625
  %v66 = vmul.f32 %v34, 0.0625
  %v67 = vmul.f32 %v35, 0.0625
  %v68 = vmul.f32 %v36, 0.0625
  %v69 = vmul.f32 %v37, 0.0625
  %v70 = vmul.f32 %v38, 0.0625
  %v71 = vmul.f32 %v39, 0.0625
  %v72 = vld [vmem:[%s0 + $0x1] sm:$0xff]
  %v73 = vld [vmem:[%s0 + $0x9] sm:$0xff]
  %v74 = vld [vmem:[%s0 + $0x19] sm:$0xff]
  %v75 = vld [vmem:[%s0 + $0x21] sm:$0xff]
  %v76 = vld [vmem:[%s0 + $0x31] sm:$0xff]
  %v77 = vld [vmem:[%s0 + $0x39] sm:$0xff]
  %v78 = vld [vmem:[%s0 + $0x49] sm:$0xff]
  %v79 = vld [vmem:[%s0 + $0x51] sm:$0xff]
  %v80 = vld [vmem:[%s0 + $0x61] sm:$0xff]
  %v81 = vld [vmem:[%s0 + $0x69] sm:$0xff]
  %v82 = vld [vmem:[%s0 + $0x79] sm:$0xff]
  %v83 = vld [vmem:[%s0 + $0x81] sm:$0xff]
  %v84 = vld [vmem:[%s0 + $0x91] sm:$0xff]
  %v85 = vld [vmem:[%s0 + $0x99] sm:$0xff]
  %v86 = vld [vmem:[%s0 + $0xa9] sm:$0xff]
  %v87 = vld [vmem:[%s0 + $0xb1] sm:$0xff]
  %v88 = vld [vmem:[%s0 + $0xc1] sm:$0xff]
  %v89 = vld [vmem:[%s0 + $0xc9] sm:$0xff]
  %v90 = vld [vmem:[%s0 + $0xd9] sm:$0xff]
  %v91 = vld [vmem:[%s0 + $0xe1] sm:$0xff]
  %v92 = vld [vmem:[%s0 + $0xf1] sm:$0xff]
  %v93 = vld [vmem:[%s0 + $0xf9] sm:$0xff]
  %v94 = vld [vmem:[%s0 + $0x109] sm:$0xff]
  %v95 = vld [vmem:[%s0 + $0x111] sm:$0xff]
  %v96 = vld [vmem:[%s0 + $0x121] sm:$0xff]
  %v97 = vld [vmem:[%s0 + $0x129] sm:$0xff]
  %v98 = vld [vmem:[%s0 + $0x139] sm:$0xff]
  %v99 = vld [vmem:[%s0 + $0x141] sm:$0xff]
  %v100 = vld [vmem:[%s0 + $0x151] sm:$0xff]
  %v101 = vld [vmem:[%s0 + $0x159] sm:$0xff]
  %v102 = vld [vmem:[%s0 + $0x169] sm:$0xff]
  %v103 = vld [vmem:[%s0 + $0x171] sm:$0xff]
  %v104 = vmul.f32 %v72, 0.1875
  %v105 = vmul.f32 %v73, 0.1875
  %v106 = vmul.f32 %v74, 0.1875
  %v107 = vmul.f32 %v75, 0.1875
  %v108 = vmul.f32 %v76, 0.1875
  %v109 = vmul.f32 %v77, 0.1875
  %v110 = vmul.f32 %v78, 0.1875
  %v111 = vmul.f32 %v79, 0.1875
  %v112 = vmul.f32 %v80, 0.1875
  %v113 = vmul.f32 %v81, 0.1875
  %v114 = vmul.f32 %v82, 0.1875
  %v115 = vmul.f32 %v83, 0.1875
  %v116 = vmul.f32 %v84, 0.1875
  %v117 = vmul.f32 %v85, 0.1875
  %v118 = vmul.f32 %v86, 0.1875
  %v119 = vmul.f32 %v87, 0.1875
  %v120 = vmul.f32 %v88, 0.1875
  %v121 = vmul.f32 %v89, 0.1875
  %v122 = vmul.f32 %v90, 0.1875
  %v123 = vmul.f32 %v91, 0.1875
  %v124 = vmul.f32 %v92, 0.1875
  %v125 = vmul.f32 %v93, 0.1875
  %v126 = vmul.f32 %v94, 0.1875
  %v127 = vmul.f32 %v95, 0.1875
  %v128 = vmul.f32 %v96, 0.1875
  %v129 = vmul.f32 %v97, 0.1875
  %v130 = vmul.f32 %v98, 0.1875
  %v131 = vmul.f32 %v99, 0.1875
  %v132 = vmul.f32 %v100, 0.1875
  %v133 = vmul.f32 %v101, 0.1875
  %v134 = vmul.f32 %v102, 0.1875
  %v135 = vmul.f32 %v103, 0.1875
  %v136 = vadd.f32 %v40, %v104
  %v137 = vadd.f32 %v41, %v105
  %v138 = vadd.f32 %v42, %v106
  %v139 = vadd.f32 %v43, %v107
  %v140 = vadd.f32 %v44, %v108
  %v141 = vadd.f32 %v45, %v109
  %v142 = vadd.f32 %v46, %v110
  %v143 = vadd.f32 %v47, %v111
  %v144 = vadd.f32 %v48, %v112
  %v145 = vadd.f32 %v49, %v113
  %v146 = vadd.f32 %v50, %v114
  %v147 = vadd.f32 %v51, %v115
  %v148 = vadd.f32 %v52, %v116
  %v149 = vadd.f32 %v53, %v117
  %v150 = vadd.f32 %v54, %v118
  %v151 = vadd.f32 %v55, %v119
  %v152 = vadd.f32 %v56, %v120
  %v153 = vadd.f32 %v57, %v121
  %v154 = vadd.f32 %v58, %v122
  %v155 = vadd.f32 %v59, %v123
  %v156 = vadd.f32 %v60, %v124
  %v157 = vadd.f32 %v61, %v125
  %v158 = vadd.f32 %v62, %v126
  %v159 = vadd.f32 %v63, %v127
  %v160 = vadd.f32 %v64, %v128
  %v161 = vadd.f32 %v65, %v129
  %v162 = vadd.f32 %v66, %v130
  %v163 = vadd.f32 %v67, %v131
  %v164 = vadd.f32 %v68, %v132
  %v165 = vadd.f32 %v69, %v133
  %v166 = vadd.f32 %v70, %v134
  %v167 = vadd.f32 %v71, %v135
  %s168 = scalar_lea.vmem %s0, 24
  %v169 = vld [vmem:[%s168] sm:$0xff]
  %v170 = vld [vmem:[%s168 + $0x8] sm:$0xff]
  %v171 = vld [vmem:[%s168 + $0x18] sm:$0xff]
  %v172 = vld [vmem:[%s168 + $0x20] sm:$0xff]
  %v173 = vld [vmem:[%s168 + $0x30] sm:$0xff]
  %v174 = vld [vmem:[%s168 + $0x38] sm:$0xff]
  %v175 = vld [vmem:[%s168 + $0x48] sm:$0xff]
  %v176 = vld [vmem:[%s168 + $0x50] sm:$0xff]
  %v177 = vld [vmem:[%s168 + $0x60] sm:$0xff]
  %v178 = vld [vmem:[%s168 + $0x68] sm:$0xff]
  %v179 = vld [vmem:[%s168 + $0x78] sm:$0xff]
  %v180 = vld [vmem:[%s168 + $0x80] sm:$0xff]
  %v181 = vld [vmem:[%s168 + $0x90] sm:$0xff]
  %v182 = vld [vmem:[%s168 + $0x98] sm:$0xff]
  %v183 = vld [vmem:[%s168 + $0xa8] sm:$0xff]
  %v184 = vld [vmem:[%s168 + $0xb0] sm:$0xff]
  %v185 = vld [vmem:[%s168 + $0xc0] sm:$0xff]
  %v186 = vld [vmem:[%s168 + $0xc8] sm:$0xff]
  %v187 = vld [vmem:[%s168 + $0xd8] sm:$0xff]
  %v188 = vld [vmem:[%s168 + $0xe0] sm:$0xff]
  %v189 = vld [vmem:[%s168 + $0xf0] sm:$0xff]
  %v190 = vld [vmem:[%s168 + $0xf8] sm:$0xff]
  %v191 = vld [vmem:[%s168 + $0x108] sm:$0xff]
  %v192 = vld [vmem:[%s168 + $0x110] sm:$0xff]
  %v193 = vld [vmem:[%s168 + $0x120] sm:$0xff]
  %v194 = vld [vmem:[%s168 + $0x128] sm:$0xff]
  %v195 = vld [vmem:[%s168 + $0x138] sm:$0xff]
  %v196 = vld [vmem:[%s168 + $0x140] sm:$0xff]
  %v197 = vld [vmem:[%s168 + $0x150] sm:$0xff]
  %v198 = vld [vmem:[%s168 + $0x158] sm:$0xff]
  %v199 = vld [vmem:[%s168 + $0x168] sm:$0xff]
  %v200 = vld [vmem:[%s168 + $0x170] sm:$0xff]
  %v201 = vmul.f32 %v169, 0.1875
  %v202 = vmul.f32 %v170, 0.1875
  %v203 = vmul.f32 %v171, 0.1875
  %v204 = vmul.f32 %v172, 0.1875
  %v205 = vmul.f32 %v173, 0.1875
  %v206 = vmul.f32 %v174, 0.1875
  %v207 = vmul.f32 %v175, 0.1875
  %v208 = vmul.f32 %v176, 0.1875
  %v209 = vmul.f32 %v177, 0.1875
  %v210 = vmul.f32 %v178, 0.1875
  %v211 = vmul.f32 %v179, 0.1875
  %v212 = vmul.f32 %v180, 0.1875
  %v213 = vmul.f32 %v181, 0.1875
  %v214 = vmul.f32 %v182, 0.1875
  %v215 = vmul.f32 %v183, 0.1875
  %v216 = vmul.f32 %v184, 0.1875
  %v217 = vmul.f32 %v185, 0.1875
  %v218 = vmul.f32 %v186, 0.1875
  %v219 = vmul.f32 %v187, 0.1875
  %v220 = vmul.f32 %v188, 0.1875
  %v221 = vmul.f32 %v189, 0.1875
  %v222 = vmul.f32 %v190, 0.1875
  %v223 = vmul.f32 %v191, 0.1875
  %v224 = vmul.f32 %v192, 0.1875
  %v225 = vmul.f32 %v193, 0.1875
  %v226 = vmul.f32 %v194, 0.1875
  %v227 = vmul.f32 %v195, 0.1875
  %v228 = vmul.f32 %v196, 0.1875
  %v229 = vmul.f32 %v197, 0.1875
  %v230 = vmul.f32 %v198, 0.1875
  %v231 = vmul.f32 %v199, 0.1875
  %v232 = vmul.f32 %v200, 0.1875
  %v233 = vadd.f32 %v136, %v201
  %v234 = vadd.f32 %v137, %v202
  %v235 = vadd.f32 %v138, %v203
  %v236 = vadd.f32 %v139, %v204
  %v237 = vadd.f32 %v140, %v205
  %v238 = vadd.f32 %v141, %v206
  %v239 = vadd.f32 %v142, %v207
  %v240 = vadd.f32 %v143, %v208
  %v241 = vadd.f32 %v144, %v209
  %v242 = vadd.f32 %v145, %v210
  %v243 = vadd.f32 %v146, %v211
  %v244 = vadd.f32 %v147, %v212
  %v245 = vadd.f32 %v148, %v213
  %v246 = vadd.f32 %v149, %v214
  %v247 = vadd.f32 %v150, %v215
  %v248 = vadd.f32 %v151, %v216
  %v249 = vadd.f32 %v152, %v217
  %v250 = vadd.f32 %v153, %v218
  %v251 = vadd.f32 %v154, %v219
  %v252 = vadd.f32 %v155, %v220
  %v253 = vadd.f32 %v156, %v221
  %v254 = vadd.f32 %v157, %v222
  %v255 = vadd.f32 %v158, %v223
  %v256 = vadd.f32 %v159, %v224
  %v257 = vadd.f32 %v160, %v225
  %v258 = vadd.f32 %v161, %v226
  %v259 = vadd.f32 %v162, %v227
  %v260 = vadd.f32 %v163, %v228
  %v261 = vadd.f32 %v164, %v229
  %v262 = vadd.f32 %v165, %v230
  %v263 = vadd.f32 %v166, %v231
  %v264 = vadd.f32 %v167, %v232
  %v265 = vld [vmem:[%s168 + $0x1] sm:$0xff]
  %v266 = vld [vmem:[%s168 + $0x9] sm:$0xff]
  %v267 = vld [vmem:[%s168 + $0x19] sm:$0xff]
  %v268 = vld [vmem:[%s168 + $0x21] sm:$0xff]
  %v269 = vld [vmem:[%s168 + $0x31] sm:$0xff]
  %v270 = vld [vmem:[%s168 + $0x39] sm:$0xff]
  %v271 = vld [vmem:[%s168 + $0x49] sm:$0xff]
  %v272 = vld [vmem:[%s168 + $0x51] sm:$0xff]
  %v273 = vld [vmem:[%s168 + $0x61] sm:$0xff]
  %v274 = vld [vmem:[%s168 + $0x69] sm:$0xff]
  %v275 = vld [vmem:[%s168 + $0x79] sm:$0xff]
  %v276 = vld [vmem:[%s168 + $0x81] sm:$0xff]
  %v277 = vld [vmem:[%s168 + $0x91] sm:$0xff]
  %v278 = vld [vmem:[%s168 + $0x99] sm:$0xff]
  %v279 = vld [vmem:[%s168 + $0xa9] sm:$0xff]
  %v280 = vld [vmem:[%s168 + $0xb1] sm:$0xff]
  %v281 = vld [vmem:[%s168 + $0xc1] sm:$0xff]
  %v282 = vld [vmem:[%s168 + $0xc9] sm:$0xff]
  %v283 = vld [vmem:[%s168 + $0xd9] sm:$0xff]
  %v284 = vld [vmem:[%s168 + $0xe1] sm:$0xff]
  %v285 = vld [vmem:[%s168 + $0xf1] sm:$0xff]
  %v286 = vld [vmem:[%s168 + $0xf9] sm:$0xff]
  %v287 = vld [vmem:[%s168 + $0x109] sm:$0xff]
  %v288 = vld [vmem:[%s168 + $0x111] sm:$0xff]
  %v289 = vld [vmem:[%s168 + $0x121] sm:$0xff]
  %v290 = vld [vmem:[%s168 + $0x129] sm:$0xff]
  %v291 = vld [vmem:[%s168 + $0x139] sm:$0xff]
  %v292 = vld [vmem:[%s168 + $0x141] sm:$0xff]
  %v293 = vld [vmem:[%s168 + $0x151] sm:$0xff]
  %v294 = vld [vmem:[%s168 + $0x159] sm:$0xff]
  %v295 = vld [vmem:[%s168 + $0x169] sm:$0xff]
  %v296 = vld [vmem:[%s168 + $0x171] sm:$0xff]
  %v297 = vmul.f32 %v265, 0.5625
  %v298 = vmul.f32 %v266, 0.5625
  %v299 = vmul.f32 %v267, 0.5625
  %v300 = vmul.f32 %v268, 0.5625
  %v301 = vmul.f32 %v269, 0.5625
  %v302 = vmul.f32 %v270, 0.5625
  %v303 = vmul.f32 %v271, 0.5625
  %v304 = vmul.f32 %v272, 0.5625
  %v305 = vmul.f32 %v273, 0.5625
  %v306 = vmul.f32 %v274, 0.5625
  %v307 = vmul.f32 %v275, 0.5625
  %v308 = vmul.f32 %v276, 0.5625
  %v309 = vmul.f32 %v277, 0.5625
  %v310 = vmul.f32 %v278, 0.5625
  %v311 = vmul.f32 %v279, 0.5625
  %v312 = vmul.f32 %v280, 0.5625
  %v313 = vmul.f32 %v281, 0.5625
  %v314 = vmul.f32 %v282, 0.5625
  %v315 = vmul.f32 %v283, 0.5625
  %v316 = vmul.f32 %v284, 0.5625
  %v317 = vmul.f32 %v285, 0.5625
  %v318 = vmul.f32 %v286, 0.5625
  %v319 = vmul.f32 %v287, 0.5625
  %v320 = vmul.f32 %v288, 0.5625
  %v321 = vmul.f32 %v289, 0.5625
  %v322 = vmul.f32 %v290, 0.5625
  %v323 = vmul.f32 %v291, 0.5625
  %v324 = vmul.f32 %v292, 0.5625
  %v325 = vmul.f32 %v293, 0.5625
  %v326 = vmul.f32 %v294, 0.5625
  %v327 = vmul.f32 %v295, 0.5625
  %v328 = vmul.f32 %v296, 0.5625
  %v329 = vadd.f32 %v233, %v297
  %v330 = vadd.f32 %v234, %v298
  %v331 = vadd.f32 %v235, %v299
  %v332 = vadd.f32 %v236, %v300
  %v333 = vadd.f32 %v237, %v301
  %v334 = vadd.f32 %v238, %v302
  %v335 = vadd.f32 %v239, %v303
  %v336 = vadd.f32 %v240, %v304
  %v337 = vadd.f32 %v241, %v305
  %v338 = vadd.f32 %v242, %v306
  %v339 = vadd.f32 %v243, %v307
  %v340 = vadd.f32 %v244, %v308
  %v341 = vadd.f32 %v245, %v309
  %v342 = vadd.f32 %v246, %v310
  %v343 = vadd.f32 %v247, %v311
  %v344 = vadd.f32 %v248, %v312
  %v345 = vadd.f32 %v249, %v313
  %v346 = vadd.f32 %v250, %v314
  %v347 = vadd.f32 %v251, %v315
  %v348 = vadd.f32 %v252, %v316
  %v349 = vadd.f32 %v253, %v317
  %v350 = vadd.f32 %v254, %v318
  %v351 = vadd.f32 %v255, %v319
  %v352 = vadd.f32 %v256, %v320
  %v353 = vadd.f32 %v257, %v321
  %v354 = vadd.f32 %v258, %v322
  %v355 = vadd.f32 %v259, %v323
  %v356 = vadd.f32 %v260, %v324
  %v357 = vadd.f32 %v261, %v325
  %v358 = vadd.f32 %v262, %v326
  %v359 = vadd.f32 %v263, %v327
  %v360 = vadd.f32 %v264, %v328
  %vm361 = vcmask 64512
  %362 = vst.msk [vmem:[%s1] sm:$0xff] %vm361, %v329
  %363 = vst.msk [vmem:[%s1 + $0x8] sm:$0xff] %vm361, %v330
  %364 = vst.msk [vmem:[%s1 + $0x10] sm:$0xff] %vm361, %v331
  %365 = vst.msk [vmem:[%s1 + $0x18] sm:$0xff] %vm361, %v332
  %366 = vst.msk [vmem:[%s1 + $0x20] sm:$0xff] %vm361, %v333
  %367 = vst.msk [vmem:[%s1 + $0x28] sm:$0xff] %vm361, %v334
  %368 = vst.msk [vmem:[%s1 + $0x30] sm:$0xff] %vm361, %v335
  %369 = vst.msk [vmem:[%s1 + $0x38] sm:$0xff] %vm361, %v336
  %370 = vst.msk [vmem:[%s1 + $0x40] sm:$0xff] %vm361, %v337
  %371 = vst.msk [vmem:[%s1 + $0x48] sm:$0xff] %vm361, %v338
  %372 = vst.msk [vmem:[%s1 + $0x50] sm:$0xff] %vm361, %v339
  %373 = vst.msk [vmem:[%s1 + $0x58] sm:$0xff] %vm361, %v340
  %374 = vst.msk [vmem:[%s1 + $0x60] sm:$0xff] %vm361, %v341
  %375 = vst.msk [vmem:[%s1 + $0x68] sm:$0xff] %vm361, %v342
  %376 = vst.msk [vmem:[%s1 + $0x70] sm:$0xff] %vm361, %v343
  %377 = vst.msk [vmem:[%s1 + $0x78] sm:$0xff] %vm361, %v344
  %378 = vst.msk [vmem:[%s1 + $0x80] sm:$0xff] %vm361, %v345
  %379 = vst.msk [vmem:[%s1 + $0x88] sm:$0xff] %vm361, %v346
  %380 = vst.msk [vmem:[%s1 + $0x90] sm:$0xff] %vm361, %v347
  %381 = vst.msk [vmem:[%s1 + $0x98] sm:$0xff] %vm361, %v348
  %382 = vst.msk [vmem:[%s1 + $0xa0] sm:$0xff] %vm361, %v349
  %383 = vst.msk [vmem:[%s1 + $0xa8] sm:$0xff] %vm361, %v350
  %384 = vst.msk [vmem:[%s1 + $0xb0] sm:$0xff] %vm361, %v351
  %385 = vst.msk [vmem:[%s1 + $0xb8] sm:$0xff] %vm361, %v352
  %386 = vst.msk [vmem:[%s1 + $0xc0] sm:$0xff] %vm361, %v353
  %387 = vst.msk [vmem:[%s1 + $0xc8] sm:$0xff] %vm361, %v354
  %388 = vst.msk [vmem:[%s1 + $0xd0] sm:$0xff] %vm361, %v355
  %389 = vst.msk [vmem:[%s1 + $0xd8] sm:$0xff] %vm361, %v356
  %390 = vst.msk [vmem:[%s1 + $0xe0] sm:$0xff] %vm361, %v357
  %391 = vst.msk [vmem:[%s1 + $0xe8] sm:$0xff] %vm361, %v358
  %392 = vst.msk [vmem:[%s1 + $0xf0] sm:$0xff] %vm361, %v359
  %393 = vst.msk [vmem:[%s1 + $0xf8] sm:$0xff] %vm361, %v360
  %v394 = vld [vmem:[%s0 + $0x1] sm:$0xff]
  %v395 = vld [vmem:[%s0 + $0x9] sm:$0xff]
  %v396 = vld [vmem:[%s0 + $0x19] sm:$0xff]
  %v397 = vld [vmem:[%s0 + $0x21] sm:$0xff]
  %v398 = vld [vmem:[%s0 + $0x31] sm:$0xff]
  %v399 = vld [vmem:[%s0 + $0x39] sm:$0xff]
  %v400 = vld [vmem:[%s0 + $0x49] sm:$0xff]
  %v401 = vld [vmem:[%s0 + $0x51] sm:$0xff]
  %v402 = vld [vmem:[%s0 + $0x61] sm:$0xff]
  %v403 = vld [vmem:[%s0 + $0x69] sm:$0xff]
  %v404 = vld [vmem:[%s0 + $0x79] sm:$0xff]
  %v405 = vld [vmem:[%s0 + $0x81] sm:$0xff]
  %v406 = vld [vmem:[%s0 + $0x91] sm:$0xff]
  %v407 = vld [vmem:[%s0 + $0x99] sm:$0xff]
  %v408 = vld [vmem:[%s0 + $0xa9] sm:$0xff]
  %v409 = vld [vmem:[%s0 + $0xb1] sm:$0xff]
  %v410 = vld [vmem:[%s0 + $0xc1] sm:$0xff]
  %v411 = vld [vmem:[%s0 + $0xc9] sm:$0xff]
  %v412 = vld [vmem:[%s0 + $0xd9] sm:$0xff]
  %v413 = vld [vmem:[%s0 + $0xe1] sm:$0xff]
  %v414 = vld [vmem:[%s0 + $0xf1] sm:$0xff]
  %v415 = vld [vmem:[%s0 + $0xf9] sm:$0xff]
  %v416 = vld [vmem:[%s0 + $0x109] sm:$0xff]
  %v417 = vld [vmem:[%s0 + $0x111] sm:$0xff]
  %v418 = vld [vmem:[%s0 + $0x121] sm:$0xff]
  %v419 = vld [vmem:[%s0 + $0x129] sm:$0xff]
  %v420 = vld [vmem:[%s0 + $0x139] sm:$0xff]
  %v421 = vld [vmem:[%s0 + $0x141] sm:$0xff]
  %v422 = vld [vmem:[%s0 + $0x151] sm:$0xff]
  %v423 = vld [vmem:[%s0 + $0x159] sm:$0xff]
  %v424 = vld [vmem:[%s0 + $0x169] sm:$0xff]
  %v425 = vld [vmem:[%s0 + $0x171] sm:$0xff]
  %v426 = vmul.f32 %v394, 0.1875
  %v427 = vmul.f32 %v395, 0.1875
  %v428 = vmul.f32 %v396, 0.1875
  %v429 = vmul.f32 %v397, 0.1875
  %v430 = vmul.f32 %v398, 0.1875
  %v431 = vmul.f32 %v399, 0.1875
  %v432 = vmul.f32 %v400, 0.1875
  %v433 = vmul.f32 %v401, 0.1875
  %v434 = vmul.f32 %v402, 0.1875
  %v435 = vmul.f32 %v403, 0.1875
  %v436 = vmul.f32 %v404, 0.1875
  %v437 = vmul.f32 %v405, 0.1875
  %v438 = vmul.f32 %v406, 0.1875
  %v439 = vmul.f32 %v407, 0.1875
  %v440 = vmul.f32 %v408, 0.1875
  %v441 = vmul.f32 %v409, 0.1875
  %v442 = vmul.f32 %v410, 0.1875
  %v443 = vmul.f32 %v411, 0.1875
  %v444 = vmul.f32 %v412, 0.1875
  %v445 = vmul.f32 %v413, 0.1875
  %v446 = vmul.f32 %v414, 0.1875
  %v447 = vmul.f32 %v415, 0.1875
  %v448 = vmul.f32 %v416, 0.1875
  %v449 = vmul.f32 %v417, 0.1875
  %v450 = vmul.f32 %v418, 0.1875
  %v451 = vmul.f32 %v419, 0.1875
  %v452 = vmul.f32 %v420, 0.1875
  %v453 = vmul.f32 %v421, 0.1875
  %v454 = vmul.f32 %v422, 0.1875
  %v455 = vmul.f32 %v423, 0.1875
  %v456 = vmul.f32 %v424, 0.1875
  %v457 = vmul.f32 %v425, 0.1875
  %v458 = vld [vmem:[%s0 + $0x2] sm:$0xff]
  %v459 = vld [vmem:[%s0 + $0xa] sm:$0xff]
  %v460 = vld [vmem:[%s0 + $0x1a] sm:$0xff]
  %v461 = vld [vmem:[%s0 + $0x22] sm:$0xff]
  %v462 = vld [vmem:[%s0 + $0x32] sm:$0xff]
  %v463 = vld [vmem:[%s0 + $0x3a] sm:$0xff]
  %v464 = vld [vmem:[%s0 + $0x4a] sm:$0xff]
  %v465 = vld [vmem:[%s0 + $0x52] sm:$0xff]
  %v466 = vld [vmem:[%s0 + $0x62] sm:$0xff]
  %v467 = vld [vmem:[%s0 + $0x6a] sm:$0xff]
  %v468 = vld [vmem:[%s0 + $0x7a] sm:$0xff]
  %v469 = vld [vmem:[%s0 + $0x82] sm:$0xff]
  %v470 = vld [vmem:[%s0 + $0x92] sm:$0xff]
  %v471 = vld [vmem:[%s0 + $0x9a] sm:$0xff]
  %v472 = vld [vmem:[%s0 + $0xaa] sm:$0xff]
  %v473 = vld [vmem:[%s0 + $0xb2] sm:$0xff]
  %v474 = vld [vmem:[%s0 + $0xc2] sm:$0xff]
  %v475 = vld [vmem:[%s0 + $0xca] sm:$0xff]
  %v476 = vld [vmem:[%s0 + $0xda] sm:$0xff]
  %v477 = vld [vmem:[%s0 + $0xe2] sm:$0xff]
  %v478 = vld [vmem:[%s0 + $0xf2] sm:$0xff]
  %v479 = vld [vmem:[%s0 + $0xfa] sm:$0xff]
  %v480 = vld [vmem:[%s0 + $0x10a] sm:$0xff]
  %v481 = vld [vmem:[%s0 + $0x112] sm:$0xff]
  %v482 = vld [vmem:[%s0 + $0x122] sm:$0xff]
  %v483 = vld [vmem:[%s0 + $0x12a] sm:$0xff]
  %v484 = vld [vmem:[%s0 + $0x13a] sm:$0xff]
  %v485 = vld [vmem:[%s0 + $0x142] sm:$0xff]
  %v486 = vld [vmem:[%s0 + $0x152] sm:$0xff]
  %v487 = vld [vmem:[%s0 + $0x15a] sm:$0xff]
  %v488 = vld [vmem:[%s0 + $0x16a] sm:$0xff]
  %v489 = vld [vmem:[%s0 + $0x172] sm:$0xff]
  %v490 = vmul.f32 %v458, 0.0625
  %v491 = vmul.f32 %v459, 0.0625
  %v492 = vmul.f32 %v460, 0.0625
  %v493 = vmul.f32 %v461, 0.0625
  %v494 = vmul.f32 %v462, 0.0625
  %v495 = vmul.f32 %v463, 0.0625
  %v496 = vmul.f32 %v464, 0.0625
  %v497 = vmul.f32 %v465, 0.0625
  %v498 = vmul.f32 %v466, 0.0625
  %v499 = vmul.f32 %v467, 0.0625
  %v500 = vmul.f32 %v468, 0.0625
  %v501 = vmul.f32 %v469, 0.0625
  %v502 = vmul.f32 %v470, 0.0625
  %v503 = vmul.f32 %v471, 0.0625
  %v504 = vmul.f32 %v472, 0.0625
  %v505 = vmul.f32 %v473, 0.0625
  %v506 = vmul.f32 %v474, 0.0625
  %v507 = vmul.f32 %v475, 0.0625
  %v508 = vmul.f32 %v476, 0.0625
  %v509 = vmul.f32 %v477, 0.0625
  %v510 = vmul.f32 %v478, 0.0625
  %v511 = vmul.f32 %v479, 0.0625
  %v512 = vmul.f32 %v480, 0.0625
  %v513 = vmul.f32 %v481, 0.0625
  %v514 = vmul.f32 %v482, 0.0625
  %v515 = vmul.f32 %v483, 0.0625
  %v516 = vmul.f32 %v484, 0.0625
  %v517 = vmul.f32 %v485, 0.0625
  %v518 = vmul.f32 %v486, 0.0625
  %v519 = vmul.f32 %v487, 0.0625
  %v520 = vmul.f32 %v488, 0.0625
  %v521 = vmul.f32 %v489, 0.0625
  %v522 = vadd.f32 %v426, %v490
  %v523 = vadd.f32 %v427, %v491
  %v524 = vadd.f32 %v428, %v492
  %v525 = vadd.f32 %v429, %v493
  %v526 = vadd.f32 %v430, %v494
  %v527 = vadd.f32 %v431, %v495
  %v528 = vadd.f32 %v432, %v496
  %v529 = vadd.f32 %v433, %v497
  %v530 = vadd.f32 %v434, %v498
  %v531 = vadd.f32 %v435, %v499
  %v532 = vadd.f32 %v436, %v500
  %v533 = vadd.f32 %v437, %v501
  %v534 = vadd.f32 %v438, %v502
  %v535 = vadd.f32 %v439, %v503
  %v536 = vadd.f32 %v440, %v504
  %v537 = vadd.f32 %v441, %v505
  %v538 = vadd.f32 %v442, %v506
  %v539 = vadd.f32 %v443, %v507
  %v540 = vadd.f32 %v444, %v508
  %v541 = vadd.f32 %v445, %v509
  %v542 = vadd.f32 %v446, %v510
  %v543 = vadd.f32 %v447, %v511
  %v544 = vadd.f32 %v448, %v512
  %v545 = vadd.f32 %v449, %v513
  %v546 = vadd.f32 %v450, %v514
  %v547 = vadd.f32 %v451, %v515
  %v548 = vadd.f32 %v452, %v516
  %v549 = vadd.f32 %v453, %v517
  %v550 = vadd.f32 %v454, %v518
  %v551 = vadd.f32 %v455, %v519
  %v552 = vadd.f32 %v456, %v520
  %v553 = vadd.f32 %v457, %v521
  %v554 = vld [vmem:[%s168 + $0x1] sm:$0xff]
  %v555 = vld [vmem:[%s168 + $0x9] sm:$0xff]
  %v556 = vld [vmem:[%s168 + $0x19] sm:$0xff]
  %v557 = vld [vmem:[%s168 + $0x21] sm:$0xff]
  %v558 = vld [vmem:[%s168 + $0x31] sm:$0xff]
  %v559 = vld [vmem:[%s168 + $0x39] sm:$0xff]
  %v560 = vld [vmem:[%s168 + $0x49] sm:$0xff]
  %v561 = vld [vmem:[%s168 + $0x51] sm:$0xff]
  %v562 = vld [vmem:[%s168 + $0x61] sm:$0xff]
  %v563 = vld [vmem:[%s168 + $0x69] sm:$0xff]
  %v564 = vld [vmem:[%s168 + $0x79] sm:$0xff]
  %v565 = vld [vmem:[%s168 + $0x81] sm:$0xff]
  %v566 = vld [vmem:[%s168 + $0x91] sm:$0xff]
  %v567 = vld [vmem:[%s168 + $0x99] sm:$0xff]
  %v568 = vld [vmem:[%s168 + $0xa9] sm:$0xff]
  %v569 = vld [vmem:[%s168 + $0xb1] sm:$0xff]
  %v570 = vld [vmem:[%s168 + $0xc1] sm:$0xff]
  %v571 = vld [vmem:[%s168 + $0xc9] sm:$0xff]
  %v572 = vld [vmem:[%s168 + $0xd9] sm:$0xff]
  %v573 = vld [vmem:[%s168 + $0xe1] sm:$0xff]
  %v574 = vld [vmem:[%s168 + $0xf1] sm:$0xff]
  %v575 = vld [vmem:[%s168 + $0xf9] sm:$0xff]
  %v576 = vld [vmem:[%s168 + $0x109] sm:$0xff]
  %v577 = vld [vmem:[%s168 + $0x111] sm:$0xff]
  %v578 = vld [vmem:[%s168 + $0x121] sm:$0xff]
  %v579 = vld [vmem:[%s168 + $0x129] sm:$0xff]
  %v580 = vld [vmem:[%s168 + $0x139] sm:$0xff]
  %v581 = vld [vmem:[%s168 + $0x141] sm:$0xff]
  %v582 = vld [vmem:[%s168 + $0x151] sm:$0xff]
  %v583 = vld [vmem:[%s168 + $0x159] sm:$0xff]
  %v584 = vld [vmem:[%s168 + $0x169] sm:$0xff]
  %v585 = vld [vmem:[%s168 + $0x171] sm:$0xff]
  %v586 = vmul.f32 %v554, 0.5625
  %v587 = vmul.f32 %v555, 0.5625
  %v588 = vmul.f32 %v556, 0.5625
  %v589 = vmul.f32 %v557, 0.5625
  %v590 = vmul.f32 %v558, 0.5625
  %v591 = vmul.f32 %v559, 0.5625
  %v592 = vmul.f32 %v560, 0.5625
  %v593 = vmul.f32 %v561, 0.5625
  %v594 = vmul.f32 %v562, 0.5625
  %v595 = vmul.f32 %v563, 0.5625
  %v596 = vmul.f32 %v564, 0.5625
  %v597 = vmul.f32 %v565, 0.5625
  %v598 = vmul.f32 %v566, 0.5625
  %v599 = vmul.f32 %v567, 0.5625
  %v600 = vmul.f32 %v568, 0.5625
  %v601 = vmul.f32 %v569, 0.5625
  %v602 = vmul.f32 %v570, 0.5625
  %v603 = vmul.f32 %v571, 0.5625
  %v604 = vmul.f32 %v572, 0.5625
  %v605 = vmul.f32 %v573, 0.5625
  %v606 = vmul.f32 %v574, 0.5625
  %v607 = vmul.f32 %v575, 0.5625
  %v608 = vmul.f32 %v576, 0.5625
  %v609 = vmul.f32 %v577, 0.5625
  %v610 = vmul.f32 %v578, 0.5625
  %v611 = vmul.f32 %v579, 0.5625
  %v612 = vmul.f32 %v580, 0.5625
  %v613 = vmul.f32 %v581, 0.5625
  %v614 = vmul.f32 %v582, 0.5625
  %v615 = vmul.f32 %v583, 0.5625
  %v616 = vmul.f32 %v584, 0.5625
  %v617 = vmul.f32 %v585, 0.5625
  %v618 = vadd.f32 %v522, %v586
  %v619 = vadd.f32 %v523, %v587
  %v620 = vadd.f32 %v524, %v588
  %v621 = vadd.f32 %v525, %v589
  %v622 = vadd.f32 %v526, %v590
  %v623 = vadd.f32 %v527, %v591
  %v624 = vadd.f32 %v528, %v592
  %v625 = vadd.f32 %v529, %v593
  %v626 = vadd.f32 %v530, %v594
  %v627 = vadd.f32 %v531, %v595
  %v628 = vadd.f32 %v532, %v596
  %v629 = vadd.f32 %v533, %v597
  %v630 = vadd.f32 %v534, %v598
  %v631 = vadd.f32 %v535, %v599
  %v632 = vadd.f32 %v536, %v600
  %v633 = vadd.f32 %v537, %v601
  %v634 = vadd.f32 %v538, %v602
  %v635 = vadd.f32 %v539, %v603
  %v636 = vadd.f32 %v540, %v604
  %v637 = vadd.f32 %v541, %v605
  %v638 = vadd.f32 %v542, %v606
  %v639 = vadd.f32 %v543, %v607
  %v640 = vadd.f32 %v544, %v608
  %v641 = vadd.f32 %v545, %v609
  %v642 = vadd.f32 %v546, %v610
  %v643 = vadd.f32 %v547, %v611
  %v644 = vadd.f32 %v548, %v612
  %v645 = vadd.f32 %v549, %v613
  %v646 = vadd.f32 %v550, %v614
  %v647 = vadd.f32 %v551, %v615
  %v648 = vadd.f32 %v552, %v616
  %v649 = vadd.f32 %v553, %v617
  %v650 = vld [vmem:[%s168 + $0x2] sm:$0xff]
  %v651 = vld [vmem:[%s168 + $0xa] sm:$0xff]
  %v652 = vld [vmem:[%s168 + $0x1a] sm:$0xff]
  %v653 = vld [vmem:[%s168 + $0x22] sm:$0xff]
  %v654 = vld [vmem:[%s168 + $0x32] sm:$0xff]
  %v655 = vld [vmem:[%s168 + $0x3a] sm:$0xff]
  %v656 = vld [vmem:[%s168 + $0x4a] sm:$0xff]
  %v657 = vld [vmem:[%s168 + $0x52] sm:$0xff]
  %v658 = vld [vmem:[%s168 + $0x62] sm:$0xff]
  %v659 = vld [vmem:[%s168 + $0x6a] sm:$0xff]
  %v660 = vld [vmem:[%s168 + $0x7a] sm:$0xff]
  %v661 = vld [vmem:[%s168 + $0x82] sm:$0xff]
  %v662 = vld [vmem:[%s168 + $0x92] sm:$0xff]
  %v663 = vld [vmem:[%s168 + $0x9a] sm:$0xff]
  %v664 = vld [vmem:[%s168 + $0xaa] sm:$0xff]
  %v665 = vld [vmem:[%s168 + $0xb2] sm:$0xff]
  %v666 = vld [vmem:[%s168 + $0xc2] sm:$0xff]
  %v667 = vld [vmem:[%s168 + $0xca] sm:$0xff]
  %v668 = vld [vmem:[%s168 + $0xda] sm:$0xff]
  %v669 = vld [vmem:[%s168 + $0xe2] sm:$0xff]
  %v670 = vld [vmem:[%s168 + $0xf2] sm:$0xff]
  %v671 = vld [vmem:[%s168 + $0xfa] sm:$0xff]
  %v672 = vld [vmem:[%s168 + $0x10a] sm:$0xff]
  %v673 = vld [vmem:[%s168 + $0x112] sm:$0xff]
  %v674 = vld [vmem:[%s168 + $0x122] sm:$0xff]
  %v675 = vld [vmem:[%s168 + $0x12a] sm:$0xff]
  %v676 = vld [vmem:[%s168 + $0x13a] sm:$0xff]
  %v677 = vld [vmem:[%s168 + $0x142] sm:$0xff]
  %v678 = vld [vmem:[%s168 + $0x152] sm:$0xff]
  %v679 = vld [vmem:[%s168 + $0x15a] sm:$0xff]
  %v680 = vld [vmem:[%s168 + $0x16a] sm:$0xff]
  %v681 = vld [vmem:[%s168 + $0x172] sm:$0xff]
  %v682 = vmul.f32 %v650, 0.1875
  %v683 = vmul.f32 %v651, 0.1875
  %v684 = vmul.f32 %v652, 0.1875
  %v685 = vmul.f32 %v653, 0.1875
  %v686 = vmul.f32 %v654, 0.1875
  %v687 = vmul.f32 %v655, 0.1875
  %v688 = vmul.f32 %v656, 0.1875
  %v689 = vmul.f32 %v657, 0.1875
  %v690 = vmul.f32 %v658, 0.1875
  %v691 = vmul.f32 %v659, 0.1875
  %v692 = vmul.f32 %v660, 0.1875
  %v693 = vmul.f32 %v661, 0.1875
  %v694 = vmul.f32 %v662, 0.1875
  %v695 = vmul.f32 %v663, 0.1875
  %v696 = vmul.f32 %v664, 0.1875
  %v697 = vmul.f32 %v665, 0.1875
  %v698 = vmul.f32 %v666, 0.1875
  %v699 = vmul.f32 %v667, 0.1875
  %v700 = vmul.f32 %v668, 0.1875
  %v701 = vmul.f32 %v669, 0.1875
  %v702 = vmul.f32 %v670, 0.1875
  %v703 = vmul.f32 %v671, 0.1875
  %v704 = vmul.f32 %v672, 0.1875
  %v705 = vmul.f32 %v673, 0.1875
  %v706 = vmul.f32 %v674, 0.1875
  %v707 = vmul.f32 %v675, 0.1875
  %v708 = vmul.f32 %v676, 0.1875
  %v709 = vmul.f32 %v677, 0.1875
  %v710 = vmul.f32 %v678, 0.1875
  %v711 = vmul.f32 %v679, 0.1875
  %v712 = vmul.f32 %v680, 0.1875
  %v713 = vmul.f32 %v681, 0.1875
  %v714 = vadd.f32 %v618, %v682
  %v715 = vadd.f32 %v619, %v683
  %v716 = vadd.f32 %v620, %v684
  %v717 = vadd.f32 %v621, %v685
  %v718 = vadd.f32 %v622, %v686
  %v719 = vadd.f32 %v623, %v687
  %v720 = vadd.f32 %v624, %v688
  %v721 = vadd.f32 %v625, %v689
  %v722 = vadd.f32 %v626, %v690
  %v723 = vadd.f32 %v627, %v691
  %v724 = vadd.f32 %v628, %v692
  %v725 = vadd.f32 %v629, %v693
  %v726 = vadd.f32 %v630, %v694
  %v727 = vadd.f32 %v631, %v695
  %v728 = vadd.f32 %v632, %v696
  %v729 = vadd.f32 %v633, %v697
  %v730 = vadd.f32 %v634, %v698
  %v731 = vadd.f32 %v635, %v699
  %v732 = vadd.f32 %v636, %v700
  %v733 = vadd.f32 %v637, %v701
  %v734 = vadd.f32 %v638, %v702
  %v735 = vadd.f32 %v639, %v703
  %v736 = vadd.f32 %v640, %v704
  %v737 = vadd.f32 %v641, %v705
  %v738 = vadd.f32 %v642, %v706
  %v739 = vadd.f32 %v643, %v707
  %v740 = vadd.f32 %v644, %v708
  %v741 = vadd.f32 %v645, %v709
  %v742 = vadd.f32 %v646, %v710
  %v743 = vadd.f32 %v647, %v711
  %v744 = vadd.f32 %v648, %v712
  %v745 = vadd.f32 %v649, %v713
  %s746 = scalar_lea.vmem %s1, 256
  %747 = vst.msk [vmem:[%s746] sm:$0xff] %vm361, %v714
  %748 = vst.msk [vmem:[%s746 + $0x8] sm:$0xff] %vm361, %v715
  %749 = vst.msk [vmem:[%s746 + $0x10] sm:$0xff] %vm361, %v716
  %750 = vst.msk [vmem:[%s746 + $0x18] sm:$0xff] %vm361, %v717
  %751 = vst.msk [vmem:[%s746 + $0x20] sm:$0xff] %vm361, %v718
  %752 = vst.msk [vmem:[%s746 + $0x28] sm:$0xff] %vm361, %v719
  %753 = vst.msk [vmem:[%s746 + $0x30] sm:$0xff] %vm361, %v720
  %754 = vst.msk [vmem:[%s746 + $0x38] sm:$0xff] %vm361, %v721
  %755 = vst.msk [vmem:[%s746 + $0x40] sm:$0xff] %vm361, %v722
  %756 = vst.msk [vmem:[%s746 + $0x48] sm:$0xff] %vm361, %v723
  %757 = vst.msk [vmem:[%s746 + $0x50] sm:$0xff] %vm361, %v724
  %758 = vst.msk [vmem:[%s746 + $0x58] sm:$0xff] %vm361, %v725
  %759 = vst.msk [vmem:[%s746 + $0x60] sm:$0xff] %vm361, %v726
  %760 = vst.msk [vmem:[%s746 + $0x68] sm:$0xff] %vm361, %v727
  %761 = vst.msk [vmem:[%s746 + $0x70] sm:$0xff] %vm361, %v728
  %762 = vst.msk [vmem:[%s746 + $0x78] sm:$0xff] %vm361, %v729
  %763 = vst.msk [vmem:[%s746 + $0x80] sm:$0xff] %vm361, %v730
  %764 = vst.msk [vmem:[%s746 + $0x88] sm:$0xff] %vm361, %v731
  %765 = vst.msk [vmem:[%s746 + $0x90] sm:$0xff] %vm361, %v732
  %766 = vst.msk [vmem:[%s746 + $0x98] sm:$0xff] %vm361, %v733
  %767 = vst.msk [vmem:[%s746 + $0xa0] sm:$0xff] %vm361, %v734
  %768 = vst.msk [vmem:[%s746 + $0xa8] sm:$0xff] %vm361, %v735
  %769 = vst.msk [vmem:[%s746 + $0xb0] sm:$0xff] %vm361, %v736
  %770 = vst.msk [vmem:[%s746 + $0xb8] sm:$0xff] %vm361, %v737
  %771 = vst.msk [vmem:[%s746 + $0xc0] sm:$0xff] %vm361, %v738
  %772 = vst.msk [vmem:[%s746 + $0xc8] sm:$0xff] %vm361, %v739
  %773 = vst.msk [vmem:[%s746 + $0xd0] sm:$0xff] %vm361, %v740
  %774 = vst.msk [vmem:[%s746 + $0xd8] sm:$0xff] %vm361, %v741
  %775 = vst.msk [vmem:[%s746 + $0xe0] sm:$0xff] %vm361, %v742
  %776 = vst.msk [vmem:[%s746 + $0xe8] sm:$0xff] %vm361, %v743
  %777 = vst.msk [vmem:[%s746 + $0xf0] sm:$0xff] %vm361, %v744
  %778 = vst.msk [vmem:[%s746 + $0xf8] sm:$0xff] %vm361, %v745
  %v779 = vld [vmem:[%s168] sm:$0xff]
  %v780 = vld [vmem:[%s168 + $0x8] sm:$0xff]
  %v781 = vld [vmem:[%s168 + $0x18] sm:$0xff]
  %v782 = vld [vmem:[%s168 + $0x20] sm:$0xff]
  %v783 = vld [vmem:[%s168 + $0x30] sm:$0xff]
  %v784 = vld [vmem:[%s168 + $0x38] sm:$0xff]
  %v785 = vld [vmem:[%s168 + $0x48] sm:$0xff]
  %v786 = vld [vmem:[%s168 + $0x50] sm:$0xff]
  %v787 = vld [vmem:[%s168 + $0x60] sm:$0xff]
  %v788 = vld [vmem:[%s168 + $0x68] sm:$0xff]
  %v789 = vld [vmem:[%s168 + $0x78] sm:$0xff]
  %v790 = vld [vmem:[%s168 + $0x80] sm:$0xff]
  %v791 = vld [vmem:[%s168 + $0x90] sm:$0xff]
  %v792 = vld [vmem:[%s168 + $0x98] sm:$0xff]
  %v793 = vld [vmem:[%s168 + $0xa8] sm:$0xff]
  %v794 = vld [vmem:[%s168 + $0xb0] sm:$0xff]
  %v795 = vld [vmem:[%s168 + $0xc0] sm:$0xff]
  %v796 = vld [vmem:[%s168 + $0xc8] sm:$0xff]
  %v797 = vld [vmem:[%s168 + $0xd8] sm:$0xff]
  %v798 = vld [vmem:[%s168 + $0xe0] sm:$0xff]
  %v799 = vld [vmem:[%s168 + $0xf0] sm:$0xff]
  %v800 = vld [vmem:[%s168 + $0xf8] sm:$0xff]
  %v801 = vld [vmem:[%s168 + $0x108] sm:$0xff]
  %v802 = vld [vmem:[%s168 + $0x110] sm:$0xff]
  %v803 = vld [vmem:[%s168 + $0x120] sm:$0xff]
  %v804 = vld [vmem:[%s168 + $0x128] sm:$0xff]
  %v805 = vld [vmem:[%s168 + $0x138] sm:$0xff]
  %v806 = vld [vmem:[%s168 + $0x140] sm:$0xff]
  %v807 = vld [vmem:[%s168 + $0x150] sm:$0xff]
  %v808 = vld [vmem:[%s168 + $0x158] sm:$0xff]
  %v809 = vld [vmem:[%s168 + $0x168] sm:$0xff]
  %v810 = vld [vmem:[%s168 + $0x170] sm:$0xff]
  %v811 = vmul.f32 %v779, 0.1875
  %v812 = vmul.f32 %v780, 0.1875
  %v813 = vmul.f32 %v781, 0.1875
  %v814 = vmul.f32 %v782, 0.1875
  %v815 = vmul.f32 %v783, 0.1875
  %v816 = vmul.f32 %v784, 0.1875
  %v817 = vmul.f32 %v785, 0.1875
  %v818 = vmul.f32 %v786, 0.1875
  %v819 = vmul.f32 %v787, 0.1875
  %v820 = vmul.f32 %v788, 0.1875
  %v821 = vmul.f32 %v789, 0.1875
  %v822 = vmul.f32 %v790, 0.1875
  %v823 = vmul.f32 %v791, 0.1875
  %v824 = vmul.f32 %v792, 0.1875
  %v825 = vmul.f32 %v793, 0.1875
  %v826 = vmul.f32 %v794, 0.1875
  %v827 = vmul.f32 %v795, 0.1875
  %v828 = vmul.f32 %v796, 0.1875
  %v829 = vmul.f32 %v797, 0.1875
  %v830 = vmul.f32 %v798, 0.1875
  %v831 = vmul.f32 %v799, 0.1875
  %v832 = vmul.f32 %v800, 0.1875
  %v833 = vmul.f32 %v801, 0.1875
  %v834 = vmul.f32 %v802, 0.1875
  %v835 = vmul.f32 %v803, 0.1875
  %v836 = vmul.f32 %v804, 0.1875
  %v837 = vmul.f32 %v805, 0.1875
  %v838 = vmul.f32 %v806, 0.1875
  %v839 = vmul.f32 %v807, 0.1875
  %v840 = vmul.f32 %v808, 0.1875
  %v841 = vmul.f32 %v809, 0.1875
  %v842 = vmul.f32 %v810, 0.1875
  %v843 = vld [vmem:[%s168 + $0x1] sm:$0xff]
  %v844 = vld [vmem:[%s168 + $0x9] sm:$0xff]
  %v845 = vld [vmem:[%s168 + $0x19] sm:$0xff]
  %v846 = vld [vmem:[%s168 + $0x21] sm:$0xff]
  %v847 = vld [vmem:[%s168 + $0x31] sm:$0xff]
  %v848 = vld [vmem:[%s168 + $0x39] sm:$0xff]
  %v849 = vld [vmem:[%s168 + $0x49] sm:$0xff]
  %v850 = vld [vmem:[%s168 + $0x51] sm:$0xff]
  %v851 = vld [vmem:[%s168 + $0x61] sm:$0xff]
  %v852 = vld [vmem:[%s168 + $0x69] sm:$0xff]
  %v853 = vld [vmem:[%s168 + $0x79] sm:$0xff]
  %v854 = vld [vmem:[%s168 + $0x81] sm:$0xff]
  %v855 = vld [vmem:[%s168 + $0x91] sm:$0xff]
  %v856 = vld [vmem:[%s168 + $0x99] sm:$0xff]
  %v857 = vld [vmem:[%s168 + $0xa9] sm:$0xff]
  %v858 = vld [vmem:[%s168 + $0xb1] sm:$0xff]
  %v859 = vld [vmem:[%s168 + $0xc1] sm:$0xff]
  %v860 = vld [vmem:[%s168 + $0xc9] sm:$0xff]
  %v861 = vld [vmem:[%s168 + $0xd9] sm:$0xff]
  %v862 = vld [vmem:[%s168 + $0xe1] sm:$0xff]
  %v863 = vld [vmem:[%s168 + $0xf1] sm:$0xff]
  %v864 = vld [vmem:[%s168 + $0xf9] sm:$0xff]
  %v865 = vld [vmem:[%s168 + $0x109] sm:$0xff]
  %v866 = vld [vmem:[%s168 + $0x111] sm:$0xff]
  %v867 = vld [vmem:[%s168 + $0x121] sm:$0xff]
  %v868 = vld [vmem:[%s168 + $0x129] sm:$0xff]
  %v869 = vld [vmem:[%s168 + $0x139] sm:$0xff]
  %v870 = vld [vmem:[%s168 + $0x141] sm:$0xff]
  %v871 = vld [vmem:[%s168 + $0x151] sm:$0xff]
  %v872 = vld [vmem:[%s168 + $0x159] sm:$0xff]
  %v873 = vld [vmem:[%s168 + $0x169] sm:$0xff]
  %v874 = vld [vmem:[%s168 + $0x171] sm:$0xff]
  %v875 = vmul.f32 %v843, 0.5625
  %v876 = vmul.f32 %v844, 0.5625
  %v877 = vmul.f32 %v845, 0.5625
  %v878 = vmul.f32 %v846, 0.5625
  %v879 = vmul.f32 %v847, 0.5625
  %v880 = vmul.f32 %v848, 0.5625
  %v881 = vmul.f32 %v849, 0.5625
  %v882 = vmul.f32 %v850, 0.5625
  %v883 = vmul.f32 %v851, 0.5625
  %v884 = vmul.f32 %v852, 0.5625
  %v885 = vmul.f32 %v853, 0.5625
  %v886 = vmul.f32 %v854, 0.5625
  %v887 = vmul.f32 %v855, 0.5625
  %v888 = vmul.f32 %v856, 0.5625
  %v889 = vmul.f32 %v857, 0.5625
  %v890 = vmul.f32 %v858, 0.5625
  %v891 = vmul.f32 %v859, 0.5625
  %v892 = vmul.f32 %v860, 0.5625
  %v893 = vmul.f32 %v861, 0.5625
  %v894 = vmul.f32 %v862, 0.5625
  %v895 = vmul.f32 %v863, 0.5625
  %v896 = vmul.f32 %v864, 0.5625
  %v897 = vmul.f32 %v865, 0.5625
  %v898 = vmul.f32 %v866, 0.5625
  %v899 = vmul.f32 %v867, 0.5625
  %v900 = vmul.f32 %v868, 0.5625
  %v901 = vmul.f32 %v869, 0.5625
  %v902 = vmul.f32 %v870, 0.5625
  %v903 = vmul.f32 %v871, 0.5625
  %v904 = vmul.f32 %v872, 0.5625
  %v905 = vmul.f32 %v873, 0.5625
  %v906 = vmul.f32 %v874, 0.5625
  %v907 = vadd.f32 %v811, %v875
  %v908 = vadd.f32 %v812, %v876
  %v909 = vadd.f32 %v813, %v877
  %v910 = vadd.f32 %v814, %v878
  %v911 = vadd.f32 %v815, %v879
  %v912 = vadd.f32 %v816, %v880
  %v913 = vadd.f32 %v817, %v881
  %v914 = vadd.f32 %v818, %v882
  %v915 = vadd.f32 %v819, %v883
  %v916 = vadd.f32 %v820, %v884
  %v917 = vadd.f32 %v821, %v885
  %v918 = vadd.f32 %v822, %v886
  %v919 = vadd.f32 %v823, %v887
  %v920 = vadd.f32 %v824, %v888
  %v921 = vadd.f32 %v825, %v889
  %v922 = vadd.f32 %v826, %v890
  %v923 = vadd.f32 %v827, %v891
  %v924 = vadd.f32 %v828, %v892
  %v925 = vadd.f32 %v829, %v893
  %v926 = vadd.f32 %v830, %v894
  %v927 = vadd.f32 %v831, %v895
  %v928 = vadd.f32 %v832, %v896
  %v929 = vadd.f32 %v833, %v897
  %v930 = vadd.f32 %v834, %v898
  %v931 = vadd.f32 %v835, %v899
  %v932 = vadd.f32 %v836, %v900
  %v933 = vadd.f32 %v837, %v901
  %v934 = vadd.f32 %v838, %v902
  %v935 = vadd.f32 %v839, %v903
  %v936 = vadd.f32 %v840, %v904
  %v937 = vadd.f32 %v841, %v905
  %v938 = vadd.f32 %v842, %v906
  %s939 = scalar_lea.vmem %s0, 48
  %v940 = vld [vmem:[%s939] sm:$0xff]
  %v941 = vld [vmem:[%s939 + $0x8] sm:$0xff]
  %v942 = vld [vmem:[%s939 + $0x18] sm:$0xff]
  %v943 = vld [vmem:[%s939 + $0x20] sm:$0xff]
  %v944 = vld [vmem:[%s939 + $0x30] sm:$0xff]
  %v945 = vld [vmem:[%s939 + $0x38] sm:$0xff]
  %v946 = vld [vmem:[%s939 + $0x48] sm:$0xff]
  %v947 = vld [vmem:[%s939 + $0x50] sm:$0xff]
  %v948 = vld [vmem:[%s939 + $0x60] sm:$0xff]
  %v949 = vld [vmem:[%s939 + $0x68] sm:$0xff]
  %v950 = vld [vmem:[%s939 + $0x78] sm:$0xff]
  %v951 = vld [vmem:[%s939 + $0x80] sm:$0xff]
  %v952 = vld [vmem:[%s939 + $0x90] sm:$0xff]
  %v953 = vld [vmem:[%s939 + $0x98] sm:$0xff]
  %v954 = vld [vmem:[%s939 + $0xa8] sm:$0xff]
  %v955 = vld [vmem:[%s939 + $0xb0] sm:$0xff]
  %v956 = vld [vmem:[%s939 + $0xc0] sm:$0xff]
  %v957 = vld [vmem:[%s939 + $0xc8] sm:$0xff]
  %v958 = vld [vmem:[%s939 + $0xd8] sm:$0xff]
  %v959 = vld [vmem:[%s939 + $0xe0] sm:$0xff]
  %v960 = vld [vmem:[%s939 + $0xf0] sm:$0xff]
  %v961 = vld [vmem:[%s939 + $0xf8] sm:$0xff]
  %v962 = vld [vmem:[%s939 + $0x108] sm:$0xff]
  %v963 = vld [vmem:[%s939 + $0x110] sm:$0xff]
  %v964 = vld [vmem:[%s939 + $0x120] sm:$0xff]
  %v965 = vld [vmem:[%s939 + $0x128] sm:$0xff]
  %v966 = vld [vmem:[%s939 + $0x138] sm:$0xff]
  %v967 = vld [vmem:[%s939 + $0x140] sm:$0xff]
  %v968 = vld [vmem:[%s939 + $0x150] sm:$0xff]
  %v969 = vld [vmem:[%s939 + $0x158] sm:$0xff]
  %v970 = vld [vmem:[%s939 + $0x168] sm:$0xff]
  %v971 = vld [vmem:[%s939 + $0x170] sm:$0xff]
  %v972 = vmul.f32 %v940, 0.0625
  %v973 = vmul.f32 %v941, 0.0625
  %v974 = vmul.f32 %v942, 0.0625
  %v975 = vmul.f32 %v943, 0.0625
  %v976 = vmul.f32 %v944, 0.0625
  %v977 = vmul.f32 %v945, 0.0625
  %v978 = vmul.f32 %v946, 0.0625
  %v979 = vmul.f32 %v947, 0.0625
  %v980 = vmul.f32 %v948, 0.0625
  %v981 = vmul.f32 %v949, 0.0625
  %v982 = vmul.f32 %v950, 0.0625
  %v983 = vmul.f32 %v951, 0.0625
  %v984 = vmul.f32 %v952, 0.0625
  %v985 = vmul.f32 %v953, 0.0625
  %v986 = vmul.f32 %v954, 0.0625
  %v987 = vmul.f32 %v955, 0.0625
  %v988 = vmul.f32 %v956, 0.0625
  %v989 = vmul.f32 %v957, 0.0625
  %v990 = vmul.f32 %v958, 0.0625
  %v991 = vmul.f32 %v959, 0.0625
  %v992 = vmul.f32 %v960, 0.0625
  %v993 = vmul.f32 %v961, 0.0625
  %v994 = vmul.f32 %v962, 0.0625
  %v995 = vmul.f32 %v963, 0.0625
  %v996 = vmul.f32 %v964, 0.0625
  %v997 = vmul.f32 %v965, 0.0625
  %v998 = vmul.f32 %v966, 0.0625
  %v999 = vmul.f32 %v967, 0.0625
  %v1000 = vmul.f32 %v968, 0.0625
  %v1001 = vmul.f32 %v969, 0.0625
  %v1002 = vmul.f32 %v970, 0.0625
  %v1003 = vmul.f32 %v971, 0.0625
  %v1004 = vadd.f32 %v907, %v972
  %v1005 = vadd.f32 %v908, %v973
  %v1006 = vadd.f32 %v909, %v974
  %v1007 = vadd.f32 %v910, %v975
  %v1008 = vadd.f32 %v911, %v976
  %v1009 = vadd.f32 %v912, %v977
  %v1010 = vadd.f32 %v913, %v978
  %v1011 = vadd.f32 %v914, %v979
  %v1012 = vadd.f32 %v915, %v980
  %v1013 = vadd.f32 %v916, %v981
  %v1014 = vadd.f32 %v917, %v982
  %v1015 = vadd.f32 %v918, %v983
  %v1016 = vadd.f32 %v919, %v984
  %v1017 = vadd.f32 %v920, %v985
  %v1018 = vadd.f32 %v921, %v986
  %v1019 = vadd.f32 %v922, %v987
  %v1020 = vadd.f32 %v923, %v988
  %v1021 = vadd.f32 %v924, %v989
  %v1022 = vadd.f32 %v925, %v990
  %v1023 = vadd.f32 %v926, %v991
  %v1024 = vadd.f32 %v927, %v992
  %v1025 = vadd.f32 %v928, %v993
  %v1026 = vadd.f32 %v929, %v994
  %v1027 = vadd.f32 %v930, %v995
  %v1028 = vadd.f32 %v931, %v996
  %v1029 = vadd.f32 %v932, %v997
  %v1030 = vadd.f32 %v933, %v998
  %v1031 = vadd.f32 %v934, %v999
  %v1032 = vadd.f32 %v935, %v1000
  %v1033 = vadd.f32 %v936, %v1001
  %v1034 = vadd.f32 %v937, %v1002
  %v1035 = vadd.f32 %v938, %v1003
  %v1036 = vld [vmem:[%s939 + $0x1] sm:$0xff]
  %v1037 = vld [vmem:[%s939 + $0x9] sm:$0xff]
  %v1038 = vld [vmem:[%s939 + $0x19] sm:$0xff]
  %v1039 = vld [vmem:[%s939 + $0x21] sm:$0xff]
  %v1040 = vld [vmem:[%s939 + $0x31] sm:$0xff]
  %v1041 = vld [vmem:[%s939 + $0x39] sm:$0xff]
  %v1042 = vld [vmem:[%s939 + $0x49] sm:$0xff]
  %v1043 = vld [vmem:[%s939 + $0x51] sm:$0xff]
  %v1044 = vld [vmem:[%s939 + $0x61] sm:$0xff]
  %v1045 = vld [vmem:[%s939 + $0x69] sm:$0xff]
  %v1046 = vld [vmem:[%s939 + $0x79] sm:$0xff]
  %v1047 = vld [vmem:[%s939 + $0x81] sm:$0xff]
  %v1048 = vld [vmem:[%s939 + $0x91] sm:$0xff]
  %v1049 = vld [vmem:[%s939 + $0x99] sm:$0xff]
  %v1050 = vld [vmem:[%s939 + $0xa9] sm:$0xff]
  %v1051 = vld [vmem:[%s939 + $0xb1] sm:$0xff]
  %v1052 = vld [vmem:[%s939 + $0xc1] sm:$0xff]
  %v1053 = vld [vmem:[%s939 + $0xc9] sm:$0xff]
  %v1054 = vld [vmem:[%s939 + $0xd9] sm:$0xff]
  %v1055 = vld [vmem:[%s939 + $0xe1] sm:$0xff]
  %v1056 = vld [vmem:[%s939 + $0xf1] sm:$0xff]
  %v1057 = vld [vmem:[%s939 + $0xf9] sm:$0xff]
  %v1058 = vld [vmem:[%s939 + $0x109] sm:$0xff]
  %v1059 = vld [vmem:[%s939 + $0x111] sm:$0xff]
  %v1060 = vld [vmem:[%s939 + $0x121] sm:$0xff]
  %v1061 = vld [vmem:[%s939 + $0x129] sm:$0xff]
  %v1062 = vld [vmem:[%s939 + $0x139] sm:$0xff]
  %v1063 = vld [vmem:[%s939 + $0x141] sm:$0xff]
  %v1064 = vld [vmem:[%s939 + $0x151] sm:$0xff]
  %v1065 = vld [vmem:[%s939 + $0x159] sm:$0xff]
  %v1066 = vld [vmem:[%s939 + $0x169] sm:$0xff]
  %v1067 = vld [vmem:[%s939 + $0x171] sm:$0xff]
  %v1068 = vmul.f32 %v1036, 0.1875
  %v1069 = vmul.f32 %v1037, 0.1875
  %v1070 = vmul.f32 %v1038, 0.1875
  %v1071 = vmul.f32 %v1039, 0.1875
  %v1072 = vmul.f32 %v1040, 0.1875
  %v1073 = vmul.f32 %v1041, 0.1875
  %v1074 = vmul.f32 %v1042, 0.1875
  %v1075 = vmul.f32 %v1043, 0.1875
  %v1076 = vmul.f32 %v1044, 0.1875
  %v1077 = vmul.f32 %v1045, 0.1875
  %v1078 = vmul.f32 %v1046, 0.1875
  %v1079 = vmul.f32 %v1047, 0.1875
  %v1080 = vmul.f32 %v1048, 0.1875
  %v1081 = vmul.f32 %v1049, 0.1875
  %v1082 = vmul.f32 %v1050, 0.1875
  %v1083 = vmul.f32 %v1051, 0.1875
  %v1084 = vmul.f32 %v1052, 0.1875
  %v1085 = vmul.f32 %v1053, 0.1875
  %v1086 = vmul.f32 %v1054, 0.1875
  %v1087 = vmul.f32 %v1055, 0.1875
  %v1088 = vmul.f32 %v1056, 0.1875
  %v1089 = vmul.f32 %v1057, 0.1875
  %v1090 = vmul.f32 %v1058, 0.1875
  %v1091 = vmul.f32 %v1059, 0.1875
  %v1092 = vmul.f32 %v1060, 0.1875
  %v1093 = vmul.f32 %v1061, 0.1875
  %v1094 = vmul.f32 %v1062, 0.1875
  %v1095 = vmul.f32 %v1063, 0.1875
  %v1096 = vmul.f32 %v1064, 0.1875
  %v1097 = vmul.f32 %v1065, 0.1875
  %v1098 = vmul.f32 %v1066, 0.1875
  %v1099 = vmul.f32 %v1067, 0.1875
  %v1100 = vadd.f32 %v1004, %v1068
  %v1101 = vadd.f32 %v1005, %v1069
  %v1102 = vadd.f32 %v1006, %v1070
  %v1103 = vadd.f32 %v1007, %v1071
  %v1104 = vadd.f32 %v1008, %v1072
  %v1105 = vadd.f32 %v1009, %v1073
  %v1106 = vadd.f32 %v1010, %v1074
  %v1107 = vadd.f32 %v1011, %v1075
  %v1108 = vadd.f32 %v1012, %v1076
  %v1109 = vadd.f32 %v1013, %v1077
  %v1110 = vadd.f32 %v1014, %v1078
  %v1111 = vadd.f32 %v1015, %v1079
  %v1112 = vadd.f32 %v1016, %v1080
  %v1113 = vadd.f32 %v1017, %v1081
  %v1114 = vadd.f32 %v1018, %v1082
  %v1115 = vadd.f32 %v1019, %v1083
  %v1116 = vadd.f32 %v1020, %v1084
  %v1117 = vadd.f32 %v1021, %v1085
  %v1118 = vadd.f32 %v1022, %v1086
  %v1119 = vadd.f32 %v1023, %v1087
  %v1120 = vadd.f32 %v1024, %v1088
  %v1121 = vadd.f32 %v1025, %v1089
  %v1122 = vadd.f32 %v1026, %v1090
  %v1123 = vadd.f32 %v1027, %v1091
  %v1124 = vadd.f32 %v1028, %v1092
  %v1125 = vadd.f32 %v1029, %v1093
  %v1126 = vadd.f32 %v1030, %v1094
  %v1127 = vadd.f32 %v1031, %v1095
  %v1128 = vadd.f32 %v1032, %v1096
  %v1129 = vadd.f32 %v1033, %v1097
  %v1130 = vadd.f32 %v1034, %v1098
  %v1131 = vadd.f32 %v1035, %v1099
  %s1132 = scalar_lea.vmem %s1, 512
  %1133 = vst.msk [vmem:[%s1132] sm:$0xff] %vm361, %v1100
  %1134 = vst.msk [vmem:[%s1132 + $0x8] sm:$0xff] %vm361, %v1101
  %1135 = vst.msk [vmem:[%s1132 + $0x10] sm:$0xff] %vm361, %v1102
  %1136 = vst.msk [vmem:[%s1132 + $0x18] sm:$0xff] %vm361, %v1103
  %1137 = vst.msk [vmem:[%s1132 + $0x20] sm:$0xff] %vm361, %v1104
  %1138 = vst.msk [vmem:[%s1132 + $0x28] sm:$0xff] %vm361, %v1105
  %1139 = vst.msk [vmem:[%s1132 + $0x30] sm:$0xff] %vm361, %v1106
  %1140 = vst.msk [vmem:[%s1132 + $0x38] sm:$0xff] %vm361, %v1107
  %1141 = vst.msk [vmem:[%s1132 + $0x40] sm:$0xff] %vm361, %v1108
  %1142 = vst.msk [vmem:[%s1132 + $0x48] sm:$0xff] %vm361, %v1109
  %1143 = vst.msk [vmem:[%s1132 + $0x50] sm:$0xff] %vm361, %v1110
  %1144 = vst.msk [vmem:[%s1132 + $0x58] sm:$0xff] %vm361, %v1111
  %1145 = vst.msk [vmem:[%s1132 + $0x60] sm:$0xff] %vm361, %v1112
  %1146 = vst.msk [vmem:[%s1132 + $0x68] sm:$0xff] %vm361, %v1113
  %1147 = vst.msk [vmem:[%s1132 + $0x70] sm:$0xff] %vm361, %v1114
  %1148 = vst.msk [vmem:[%s1132 + $0x78] sm:$0xff] %vm361, %v1115
  %1149 = vst.msk [vmem:[%s1132 + $0x80] sm:$0xff] %vm361, %v1116
  %1150 = vst.msk [vmem:[%s1132 + $0x88] sm:$0xff] %vm361, %v1117
  %1151 = vst.msk [vmem:[%s1132 + $0x90] sm:$0xff] %vm361, %v1118
  %1152 = vst.msk [vmem:[%s1132 + $0x98] sm:$0xff] %vm361, %v1119
  %1153 = vst.msk [vmem:[%s1132 + $0xa0] sm:$0xff] %vm361, %v1120
  %1154 = vst.msk [vmem:[%s1132 + $0xa8] sm:$0xff] %vm361, %v1121
  %1155 = vst.msk [vmem:[%s1132 + $0xb0] sm:$0xff] %vm361, %v1122
  %1156 = vst.msk [vmem:[%s1132 + $0xb8] sm:$0xff] %vm361, %v1123
  %1157 = vst.msk [vmem:[%s1132 + $0xc0] sm:$0xff] %vm361, %v1124
  %1158 = vst.msk [vmem:[%s1132 + $0xc8] sm:$0xff] %vm361, %v1125
  %1159 = vst.msk [vmem:[%s1132 + $0xd0] sm:$0xff] %vm361, %v1126
  %1160 = vst.msk [vmem:[%s1132 + $0xd8] sm:$0xff] %vm361, %v1127
  %1161 = vst.msk [vmem:[%s1132 + $0xe0] sm:$0xff] %vm361, %v1128
  %1162 = vst.msk [vmem:[%s1132 + $0xe8] sm:$0xff] %vm361, %v1129
  %1163 = vst.msk [vmem:[%s1132 + $0xf0] sm:$0xff] %vm361, %v1130
  %1164 = vst.msk [vmem:[%s1132 + $0xf8] sm:$0xff] %vm361, %v1131
  %v1165 = vld [vmem:[%s168 + $0x1] sm:$0xff]
  %v1166 = vld [vmem:[%s168 + $0x9] sm:$0xff]
  %v1167 = vld [vmem:[%s168 + $0x19] sm:$0xff]
  %v1168 = vld [vmem:[%s168 + $0x21] sm:$0xff]
  %v1169 = vld [vmem:[%s168 + $0x31] sm:$0xff]
  %v1170 = vld [vmem:[%s168 + $0x39] sm:$0xff]
  %v1171 = vld [vmem:[%s168 + $0x49] sm:$0xff]
  %v1172 = vld [vmem:[%s168 + $0x51] sm:$0xff]
  %v1173 = vld [vmem:[%s168 + $0x61] sm:$0xff]
  %v1174 = vld [vmem:[%s168 + $0x69] sm:$0xff]
  %v1175 = vld [vmem:[%s168 + $0x79] sm:$0xff]
  %v1176 = vld [vmem:[%s168 + $0x81] sm:$0xff]
  %v1177 = vld [vmem:[%s168 + $0x91] sm:$0xff]
  %v1178 = vld [vmem:[%s168 + $0x99] sm:$0xff]
  %v1179 = vld [vmem:[%s168 + $0xa9] sm:$0xff]
  %v1180 = vld [vmem:[%s168 + $0xb1] sm:$0xff]
  %v1181 = vld [vmem:[%s168 + $0xc1] sm:$0xff]
  %v1182 = vld [vmem:[%s168 + $0xc9] sm:$0xff]
  %v1183 = vld [vmem:[%s168 + $0xd9] sm:$0xff]
  %v1184 = vld [vmem:[%s168 + $0xe1] sm:$0xff]
  %v1185 = vld [vmem:[%s168 + $0xf1] sm:$0xff]
  %v1186 = vld [vmem:[%s168 + $0xf9] sm:$0xff]
  %v1187 = vld [vmem:[%s168 + $0x109] sm:$0xff]
  %v1188 = vld [vmem:[%s168 + $0x111] sm:$0xff]
  %v1189 = vld [vmem:[%s168 + $0x121] sm:$0xff]
  %v1190 = vld [vmem:[%s168 + $0x129] sm:$0xff]
  %v1191 = vld [vmem:[%s168 + $0x139] sm:$0xff]
  %v1192 = vld [vmem:[%s168 + $0x141] sm:$0xff]
  %v1193 = vld [vmem:[%s168 + $0x151] sm:$0xff]
  %v1194 = vld [vmem:[%s168 + $0x159] sm:$0xff]
  %v1195 = vld [vmem:[%s168 + $0x169] sm:$0xff]
  %v1196 = vld [vmem:[%s168 + $0x171] sm:$0xff]
  %v1197 = vmul.f32 %v1165, 0.5625
  %v1198 = vmul.f32 %v1166, 0.5625
  %v1199 = vmul.f32 %v1167, 0.5625
  %v1200 = vmul.f32 %v1168, 0.5625
  %v1201 = vmul.f32 %v1169, 0.5625
  %v1202 = vmul.f32 %v1170, 0.5625
  %v1203 = vmul.f32 %v1171, 0.5625
  %v1204 = vmul.f32 %v1172, 0.5625
  %v1205 = vmul.f32 %v1173, 0.5625
  %v1206 = vmul.f32 %v1174, 0.5625
  %v1207 = vmul.f32 %v1175, 0.5625
  %v1208 = vmul.f32 %v1176, 0.5625
  %v1209 = vmul.f32 %v1177, 0.5625
  %v1210 = vmul.f32 %v1178, 0.5625
  %v1211 = vmul.f32 %v1179, 0.5625
  %v1212 = vmul.f32 %v1180, 0.5625
  %v1213 = vmul.f32 %v1181, 0.5625
  %v1214 = vmul.f32 %v1182, 0.5625
  %v1215 = vmul.f32 %v1183, 0.5625
  %v1216 = vmul.f32 %v1184, 0.5625
  %v1217 = vmul.f32 %v1185, 0.5625
  %v1218 = vmul.f32 %v1186, 0.5625
  %v1219 = vmul.f32 %v1187, 0.5625
  %v1220 = vmul.f32 %v1188, 0.5625
  %v1221 = vmul.f32 %v1189, 0.5625
  %v1222 = vmul.f32 %v1190, 0.5625
  %v1223 = vmul.f32 %v1191, 0.5625
  %v1224 = vmul.f32 %v1192, 0.5625
  %v1225 = vmul.f32 %v1193, 0.5625
  %v1226 = vmul.f32 %v1194, 0.5625
  %v1227 = vmul.f32 %v1195, 0.5625
  %v1228 = vmul.f32 %v1196, 0.5625
  %v1229 = vld [vmem:[%s168 + $0x2] sm:$0xff]
  %v1230 = vld [vmem:[%s168 + $0xa] sm:$0xff]
  %v1231 = vld [vmem:[%s168 + $0x1a] sm:$0xff]
  %v1232 = vld [vmem:[%s168 + $0x22] sm:$0xff]
  %v1233 = vld [vmem:[%s168 + $0x32] sm:$0xff]
  %v1234 = vld [vmem:[%s168 + $0x3a] sm:$0xff]
  %v1235 = vld [vmem:[%s168 + $0x4a] sm:$0xff]
  %v1236 = vld [vmem:[%s168 + $0x52] sm:$0xff]
  %v1237 = vld [vmem:[%s168 + $0x62] sm:$0xff]
  %v1238 = vld [vmem:[%s168 + $0x6a] sm:$0xff]
  %v1239 = vld [vmem:[%s168 + $0x7a] sm:$0xff]
  %v1240 = vld [vmem:[%s168 + $0x82] sm:$0xff]
  %v1241 = vld [vmem:[%s168 + $0x92] sm:$0xff]
  %v1242 = vld [vmem:[%s168 + $0x9a] sm:$0xff]
  %v1243 = vld [vmem:[%s168 + $0xaa] sm:$0xff]
  %v1244 = vld [vmem:[%s168 + $0xb2] sm:$0xff]
  %v1245 = vld [vmem:[%s168 + $0xc2] sm:$0xff]
  %v1246 = vld [vmem:[%s168 + $0xca] sm:$0xff]
  %v1247 = vld [vmem:[%s168 + $0xda] sm:$0xff]
  %v1248 = vld [vmem:[%s168 + $0xe2] sm:$0xff]
  %v1249 = vld [vmem:[%s168 + $0xf2] sm:$0xff]
  %v1250 = vld [vmem:[%s168 + $0xfa] sm:$0xff]
  %v1251 = vld [vmem:[%s168 + $0x10a] sm:$0xff]
  %v1252 = vld [vmem:[%s168 + $0x112] sm:$0xff]
  %v1253 = vld [vmem:[%s168 + $0x122] sm:$0xff]
  %v1254 = vld [vmem:[%s168 + $0x12a] sm:$0xff]
  %v1255 = vld [vmem:[%s168 + $0x13a] sm:$0xff]
  %v1256 = vld [vmem:[%s168 + $0x142] sm:$0xff]
  %v1257 = vld [vmem:[%s168 + $0x152] sm:$0xff]
  %v1258 = vld [vmem:[%s168 + $0x15a] sm:$0xff]
  %v1259 = vld [vmem:[%s168 + $0x16a] sm:$0xff]
  %v1260 = vld [vmem:[%s168 + $0x172] sm:$0xff]
  %v1261 = vmul.f32 %v1229, 0.1875
  %v1262 = vmul.f32 %v1230, 0.1875
  %v1263 = vmul.f32 %v1231, 0.1875
  %v1264 = vmul.f32 %v1232, 0.1875
  %v1265 = vmul.f32 %v1233, 0.1875
  %v1266 = vmul.f32 %v1234, 0.1875
  %v1267 = vmul.f32 %v1235, 0.1875
  %v1268 = vmul.f32 %v1236, 0.1875
  %v1269 = vmul.f32 %v1237, 0.1875
  %v1270 = vmul.f32 %v1238, 0.1875
  %v1271 = vmul.f32 %v1239, 0.1875
  %v1272 = vmul.f32 %v1240, 0.1875
  %v1273 = vmul.f32 %v1241, 0.1875
  %v1274 = vmul.f32 %v1242, 0.1875
  %v1275 = vmul.f32 %v1243, 0.1875
  %v1276 = vmul.f32 %v1244, 0.1875
  %v1277 = vmul.f32 %v1245, 0.1875
  %v1278 = vmul.f32 %v1246, 0.1875
  %v1279 = vmul.f32 %v1247, 0.1875
  %v1280 = vmul.f32 %v1248, 0.1875
  %v1281 = vmul.f32 %v1249, 0.1875
  %v1282 = vmul.f32 %v1250, 0.1875
  %v1283 = vmul.f32 %v1251, 0.1875
  %v1284 = vmul.f32 %v1252, 0.1875
  %v1285 = vmul.f32 %v1253, 0.1875
  %v1286 = vmul.f32 %v1254, 0.1875
  %v1287 = vmul.f32 %v1255, 0.1875
  %v1288 = vmul.f32 %v1256, 0.1875
  %v1289 = vmul.f32 %v1257, 0.1875
  %v1290 = vmul.f32 %v1258, 0.1875
  %v1291 = vmul.f32 %v1259, 0.1875
  %v1292 = vmul.f32 %v1260, 0.1875
  %v1293 = vadd.f32 %v1197, %v1261
  %v1294 = vadd.f32 %v1198, %v1262
  %v1295 = vadd.f32 %v1199, %v1263
  %v1296 = vadd.f32 %v1200, %v1264
  %v1297 = vadd.f32 %v1201, %v1265
  %v1298 = vadd.f32 %v1202, %v1266
  %v1299 = vadd.f32 %v1203, %v1267
  %v1300 = vadd.f32 %v1204, %v1268
  %v1301 = vadd.f32 %v1205, %v1269
  %v1302 = vadd.f32 %v1206, %v1270
  %v1303 = vadd.f32 %v1207, %v1271
  %v1304 = vadd.f32 %v1208, %v1272
  %v1305 = vadd.f32 %v1209, %v1273
  %v1306 = vadd.f32 %v1210, %v1274
  %v1307 = vadd.f32 %v1211, %v1275
  %v1308 = vadd.f32 %v1212, %v1276
  %v1309 = vadd.f32 %v1213, %v1277
  %v1310 = vadd.f32 %v1214, %v1278
  %v1311 = vadd.f32 %v1215, %v1279
  %v1312 = vadd.f32 %v1216, %v1280
  %v1313 = vadd.f32 %v1217, %v1281
  %v1314 = vadd.f32 %v1218, %v1282
  %v1315 = vadd.f32 %v1219, %v1283
  %v1316 = vadd.f32 %v1220, %v1284
  %v1317 = vadd.f32 %v1221, %v1285
  %v1318 = vadd.f32 %v1222, %v1286
  %v1319 = vadd.f32 %v1223, %v1287
  %v1320 = vadd.f32 %v1224, %v1288
  %v1321 = vadd.f32 %v1225, %v1289
  %v1322 = vadd.f32 %v1226, %v1290
  %v1323 = vadd.f32 %v1227, %v1291
  %v1324 = vadd.f32 %v1228, %v1292
  %v1325 = vld [vmem:[%s939 + $0x1] sm:$0xff]
  %v1326 = vld [vmem:[%s939 + $0x9] sm:$0xff]
  %v1327 = vld [vmem:[%s939 + $0x19] sm:$0xff]
  %v1328 = vld [vmem:[%s939 + $0x21] sm:$0xff]
  %v1329 = vld [vmem:[%s939 + $0x31] sm:$0xff]
  %v1330 = vld [vmem:[%s939 + $0x39] sm:$0xff]
  %v1331 = vld [vmem:[%s939 + $0x49] sm:$0xff]
  %v1332 = vld [vmem:[%s939 + $0x51] sm:$0xff]
  %v1333 = vld [vmem:[%s939 + $0x61] sm:$0xff]
  %v1334 = vld [vmem:[%s939 + $0x69] sm:$0xff]
  %v1335 = vld [vmem:[%s939 + $0x79] sm:$0xff]
  %v1336 = vld [vmem:[%s939 + $0x81] sm:$0xff]
  %v1337 = vld [vmem:[%s939 + $0x91] sm:$0xff]
  %v1338 = vld [vmem:[%s939 + $0x99] sm:$0xff]
  %v1339 = vld [vmem:[%s939 + $0xa9] sm:$0xff]
  %v1340 = vld [vmem:[%s939 + $0xb1] sm:$0xff]
  %v1341 = vld [vmem:[%s939 + $0xc1] sm:$0xff]
  %v1342 = vld [vmem:[%s939 + $0xc9] sm:$0xff]
  %v1343 = vld [vmem:[%s939 + $0xd9] sm:$0xff]
  %v1344 = vld [vmem:[%s939 + $0xe1] sm:$0xff]
  %v1345 = vld [vmem:[%s939 + $0xf1] sm:$0xff]
  %v1346 = vld [vmem:[%s939 + $0xf9] sm:$0xff]
  %v1347 = vld [vmem:[%s939 + $0x109] sm:$0xff]
  %v1348 = vld [vmem:[%s939 + $0x111] sm:$0xff]
  %v1349 = vld [vmem:[%s939 + $0x121] sm:$0xff]
  %v1350 = vld [vmem:[%s939 + $0x129] sm:$0xff]
  %v1351 = vld [vmem:[%s939 + $0x139] sm:$0xff]
  %v1352 = vld [vmem:[%s939 + $0x141] sm:$0xff]
  %v1353 = vld [vmem:[%s939 + $0x151] sm:$0xff]
  %v1354 = vld [vmem:[%s939 + $0x159] sm:$0xff]
  %v1355 = vld [vmem:[%s939 + $0x169] sm:$0xff]
  %v1356 = vld [vmem:[%s939 + $0x171] sm:$0xff]
  %v1357 = vmul.f32 %v1325, 0.1875
  %v1358 = vmul.f32 %v1326, 0.1875
  %v1359 = vmul.f32 %v1327, 0.1875
  %v1360 = vmul.f32 %v1328, 0.1875
  %v1361 = vmul.f32 %v1329, 0.1875
  %v1362 = vmul.f32 %v1330, 0.1875
  %v1363 = vmul.f32 %v1331, 0.1875
  %v1364 = vmul.f32 %v1332, 0.1875
  %v1365 = vmul.f32 %v1333, 0.1875
  %v1366 = vmul.f32 %v1334, 0.1875
  %v1367 = vmul.f32 %v1335, 0.1875
  %v1368 = vmul.f32 %v1336, 0.1875
  %v1369 = vmul.f32 %v1337, 0.1875
  %v1370 = vmul.f32 %v1338, 0.1875
  %v1371 = vmul.f32 %v1339, 0.1875
  %v1372 = vmul.f32 %v1340, 0.1875
  %v1373 = vmul.f32 %v1341, 0.1875
  %v1374 = vmul.f32 %v1342, 0.1875
  %v1375 = vmul.f32 %v1343, 0.1875
  %v1376 = vmul.f32 %v1344, 0.1875
  %v1377 = vmul.f32 %v1345, 0.1875
  %v1378 = vmul.f32 %v1346, 0.1875
  %v1379 = vmul.f32 %v1347, 0.1875
  %v1380 = vmul.f32 %v1348, 0.1875
  %v1381 = vmul.f32 %v1349, 0.1875
  %v1382 = vmul.f32 %v1350, 0.1875
  %v1383 = vmul.f32 %v1351, 0.1875
  %v1384 = vmul.f32 %v1352, 0.1875
  %v1385 = vmul.f32 %v1353, 0.1875
  %v1386 = vmul.f32 %v1354, 0.1875
  %v1387 = vmul.f32 %v1355, 0.1875
  %v1388 = vmul.f32 %v1356, 0.1875
  %v1389 = vadd.f32 %v1293, %v1357
  %v1390 = vadd.f32 %v1294, %v1358
  %v1391 = vadd.f32 %v1295, %v1359
  %v1392 = vadd.f32 %v1296, %v1360
  %v1393 = vadd.f32 %v1297, %v1361
  %v1394 = vadd.f32 %v1298, %v1362
  %v1395 = vadd.f32 %v1299, %v1363
  %v1396 = vadd.f32 %v1300, %v1364
  %v1397 = vadd.f32 %v1301, %v1365
  %v1398 = vadd.f32 %v1302, %v1366
  %v1399 = vadd.f32 %v1303, %v1367
  %v1400 = vadd.f32 %v1304, %v1368
  %v1401 = vadd.f32 %v1305, %v1369
  %v1402 = vadd.f32 %v1306, %v1370
  %v1403 = vadd.f32 %v1307, %v1371
  %v1404 = vadd.f32 %v1308, %v1372
  %v1405 = vadd.f32 %v1309, %v1373
  %v1406 = vadd.f32 %v1310, %v1374
  %v1407 = vadd.f32 %v1311, %v1375
  %v1408 = vadd.f32 %v1312, %v1376
  %v1409 = vadd.f32 %v1313, %v1377
  %v1410 = vadd.f32 %v1314, %v1378
  %v1411 = vadd.f32 %v1315, %v1379
  %v1412 = vadd.f32 %v1316, %v1380
  %v1413 = vadd.f32 %v1317, %v1381
  %v1414 = vadd.f32 %v1318, %v1382
  %v1415 = vadd.f32 %v1319, %v1383
  %v1416 = vadd.f32 %v1320, %v1384
  %v1417 = vadd.f32 %v1321, %v1385
  %v1418 = vadd.f32 %v1322, %v1386
  %v1419 = vadd.f32 %v1323, %v1387
  %v1420 = vadd.f32 %v1324, %v1388
  %v1421 = vld [vmem:[%s939 + $0x2] sm:$0xff]
  %v1422 = vld [vmem:[%s939 + $0xa] sm:$0xff]
  %v1423 = vld [vmem:[%s939 + $0x1a] sm:$0xff]
  %v1424 = vld [vmem:[%s939 + $0x22] sm:$0xff]
  %v1425 = vld [vmem:[%s939 + $0x32] sm:$0xff]
  %v1426 = vld [vmem:[%s939 + $0x3a] sm:$0xff]
  %v1427 = vld [vmem:[%s939 + $0x4a] sm:$0xff]
  %v1428 = vld [vmem:[%s939 + $0x52] sm:$0xff]
  %v1429 = vld [vmem:[%s939 + $0x62] sm:$0xff]
  %v1430 = vld [vmem:[%s939 + $0x6a] sm:$0xff]
  %v1431 = vld [vmem:[%s939 + $0x7a] sm:$0xff]
  %v1432 = vld [vmem:[%s939 + $0x82] sm:$0xff]
  %v1433 = vld [vmem:[%s939 + $0x92] sm:$0xff]
  %v1434 = vld [vmem:[%s939 + $0x9a] sm:$0xff]
  %v1435 = vld [vmem:[%s939 + $0xaa] sm:$0xff]
  %v1436 = vld [vmem:[%s939 + $0xb2] sm:$0xff]
  %v1437 = vld [vmem:[%s939 + $0xc2] sm:$0xff]
  %v1438 = vld [vmem:[%s939 + $0xca] sm:$0xff]
  %v1439 = vld [vmem:[%s939 + $0xda] sm:$0xff]
  %v1440 = vld [vmem:[%s939 + $0xe2] sm:$0xff]
  %v1441 = vld [vmem:[%s939 + $0xf2] sm:$0xff]
  %v1442 = vld [vmem:[%s939 + $0xfa] sm:$0xff]
  %v1443 = vld [vmem:[%s939 + $0x10a] sm:$0xff]
  %v1444 = vld [vmem:[%s939 + $0x112] sm:$0xff]
  %v1445 = vld [vmem:[%s939 + $0x122] sm:$0xff]
  %v1446 = vld [vmem:[%s939 + $0x12a] sm:$0xff]
  %v1447 = vld [vmem:[%s939 + $0x13a] sm:$0xff]
  %v1448 = vld [vmem:[%s939 + $0x142] sm:$0xff]
  %v1449 = vld [vmem:[%s939 + $0x152] sm:$0xff]
  %v1450 = vld [vmem:[%s939 + $0x15a] sm:$0xff]
  %v1451 = vld [vmem:[%s939 + $0x16a] sm:$0xff]
  %v1452 = vld [vmem:[%s939 + $0x172] sm:$0xff]
  %v1453 = vmul.f32 %v1421, 0.0625
  %v1454 = vmul.f32 %v1422, 0.0625
  %v1455 = vmul.f32 %v1423, 0.0625
  %v1456 = vmul.f32 %v1424, 0.0625
  %v1457 = vmul.f32 %v1425, 0.0625
  %v1458 = vmul.f32 %v1426, 0.0625
  %v1459 = vmul.f32 %v1427, 0.0625
  %v1460 = vmul.f32 %v1428, 0.0625
  %v1461 = vmul.f32 %v1429, 0.0625
  %v1462 = vmul.f32 %v1430, 0.0625
  %v1463 = vmul.f32 %v1431, 0.0625
  %v1464 = vmul.f32 %v1432, 0.0625
  %v1465 = vmul.f32 %v1433, 0.0625
  %v1466 = vmul.f32 %v1434, 0.0625
  %v1467 = vmul.f32 %v1435, 0.0625
  %v1468 = vmul.f32 %v1436, 0.0625
  %v1469 = vmul.f32 %v1437, 0.0625
  %v1470 = vmul.f32 %v1438, 0.0625
  %v1471 = vmul.f32 %v1439, 0.0625
  %v1472 = vmul.f32 %v1440, 0.0625
  %v1473 = vmul.f32 %v1441, 0.0625
  %v1474 = vmul.f32 %v1442, 0.0625
  %v1475 = vmul.f32 %v1443, 0.0625
  %v1476 = vmul.f32 %v1444, 0.0625
  %v1477 = vmul.f32 %v1445, 0.0625
  %v1478 = vmul.f32 %v1446, 0.0625
  %v1479 = vmul.f32 %v1447, 0.0625
  %v1480 = vmul.f32 %v1448, 0.0625
  %v1481 = vmul.f32 %v1449, 0.0625
  %v1482 = vmul.f32 %v1450, 0.0625
  %v1483 = vmul.f32 %v1451, 0.0625
  %v1484 = vmul.f32 %v1452, 0.0625
  %v1485 = vadd.f32 %v1389, %v1453
  %v1486 = vadd.f32 %v1390, %v1454
  %v1487 = vadd.f32 %v1391, %v1455
  %v1488 = vadd.f32 %v1392, %v1456
  %v1489 = vadd.f32 %v1393, %v1457
  %v1490 = vadd.f32 %v1394, %v1458
  %v1491 = vadd.f32 %v1395, %v1459
  %v1492 = vadd.f32 %v1396, %v1460
  %v1493 = vadd.f32 %v1397, %v1461
  %v1494 = vadd.f32 %v1398, %v1462
  %v1495 = vadd.f32 %v1399, %v1463
  %v1496 = vadd.f32 %v1400, %v1464
  %v1497 = vadd.f32 %v1401, %v1465
  %v1498 = vadd.f32 %v1402, %v1466
  %v1499 = vadd.f32 %v1403, %v1467
  %v1500 = vadd.f32 %v1404, %v1468
  %v1501 = vadd.f32 %v1405, %v1469
  %v1502 = vadd.f32 %v1406, %v1470
  %v1503 = vadd.f32 %v1407, %v1471
  %v1504 = vadd.f32 %v1408, %v1472
  %v1505 = vadd.f32 %v1409, %v1473
  %v1506 = vadd.f32 %v1410, %v1474
  %v1507 = vadd.f32 %v1411, %v1475
  %v1508 = vadd.f32 %v1412, %v1476
  %v1509 = vadd.f32 %v1413, %v1477
  %v1510 = vadd.f32 %v1414, %v1478
  %v1511 = vadd.f32 %v1415, %v1479
  %v1512 = vadd.f32 %v1416, %v1480
  %v1513 = vadd.f32 %v1417, %v1481
  %v1514 = vadd.f32 %v1418, %v1482
  %v1515 = vadd.f32 %v1419, %v1483
  %v1516 = vadd.f32 %v1420, %v1484
  %s1517 = scalar_lea.vmem %s1, 768
  %1518 = vst.msk [vmem:[%s1517] sm:$0xff] %vm361, %v1485
  %1519 = vst.msk [vmem:[%s1517 + $0x8] sm:$0xff] %vm361, %v1486
  %1520 = vst.msk [vmem:[%s1517 + $0x10] sm:$0xff] %vm361, %v1487
  %1521 = vst.msk [vmem:[%s1517 + $0x18] sm:$0xff] %vm361, %v1488
  %1522 = vst.msk [vmem:[%s1517 + $0x20] sm:$0xff] %vm361, %v1489
  %1523 = vst.msk [vmem:[%s1517 + $0x28] sm:$0xff] %vm361, %v1490
  %1524 = vst.msk [vmem:[%s1517 + $0x30] sm:$0xff] %vm361, %v1491
  %1525 = vst.msk [vmem:[%s1517 + $0x38] sm:$0xff] %vm361, %v1492
  %1526 = vst.msk [vmem:[%s1517 + $0x40] sm:$0xff] %vm361, %v1493
  %1527 = vst.msk [vmem:[%s1517 + $0x48] sm:$0xff] %vm361, %v1494
  %1528 = vst.msk [vmem:[%s1517 + $0x50] sm:$0xff] %vm361, %v1495
  %1529 = vst.msk [vmem:[%s1517 + $0x58] sm:$0xff] %vm361, %v1496
  %1530 = vst.msk [vmem:[%s1517 + $0x60] sm:$0xff] %vm361, %v1497
  %1531 = vst.msk [vmem:[%s1517 + $0x68] sm:$0xff] %vm361, %v1498
  %1532 = vst.msk [vmem:[%s1517 + $0x70] sm:$0xff] %vm361, %v1499
  %1533 = vst.msk [vmem:[%s1517 + $0x78] sm:$0xff] %vm361, %v1500
  %1534 = vst.msk [vmem:[%s1517 + $0x80] sm:$0xff] %vm361, %v1501
  %1535 = vst.msk [vmem:[%s1517 + $0x88] sm:$0xff] %vm361, %v1502
  %1536 = vst.msk [vmem:[%s1517 + $0x90] sm:$0xff] %vm361, %v1503
  %1537 = vst.msk [vmem:[%s1517 + $0x98] sm:$0xff] %vm361, %v1504
  %1538 = vst.msk [vmem:[%s1517 + $0xa0] sm:$0xff] %vm361, %v1505
  %1539 = vst.msk [vmem:[%s1517 + $0xa8] sm:$0xff] %vm361, %v1506
  %1540 = vst.msk [vmem:[%s1517 + $0xb0] sm:$0xff] %vm361, %v1507
  %1541 = vst.msk [vmem:[%s1517 + $0xb8] sm:$0xff] %vm361, %v1508
  %1542 = vst.msk [vmem:[%s1517 + $0xc0] sm:$0xff] %vm361, %v1509
  %1543 = vst.msk [vmem:[%s1517 + $0xc8] sm:$0xff] %vm361, %v1510
  %1544 = vst.msk [vmem:[%s1517 + $0xd0] sm:$0xff] %vm361, %v1511
  %1545 = vst.msk [vmem:[%s1517 + $0xd8] sm:$0xff] %vm361, %v1512
  %1546 = vst.msk [vmem:[%s1517 + $0xe0] sm:$0xff] %vm361, %v1513
  %1547 = vst.msk [vmem:[%s1517 + $0xe8] sm:$0xff] %vm361, %v1514
  %1548 = vst.msk [vmem:[%s1517 + $0xf0] sm:$0xff] %vm361, %v1515
  %1549 = vst.msk [vmem:[%s1517 + $0xf8] sm:$0xff] %vm361, %v1516
  // Predicated region
  $region6: #{tpu_custom_call.1} parent=0 // pred_check
    _
  $region7: #{tpu_custom_call.1} parent=0 // pred_check_branch
    %1551 = sbr.rel (0) target = $region9
  $region8: #{tpu_custom_call.1} parent=0 // pred_region
    _
  $region9: #{tpu_custom_call.1} parent=0 // pred_fallthru
    _
  // Predicated region
  $region10: #{tpu_custom_call.1} parent=0 // pred_check
    _
  $region11: #{tpu_custom_call.1} parent=0 // pred_check_branch
    %1553 = sbr.rel (0) target = $region13
  $region12: #{tpu_custom_call.1} parent=0 // pred_region
    _
  $region13: #{tpu_custom_call.1} parent=0 // pred_fallthru
    _

</llo_original>
